<compile_context>
chip_gen: v7x
topology: tpu7x:2x2x1
jax: 0.10.0
libtpu: 0.0.40
codegen_flags: <defaults>
</compile_context>

<pallas_src>
import functools
import numpy as np

import jax
import jax.numpy as jnp
from jax.experimental import pallas as pl
from jax.experimental.pallas import tpu as pltpu

LN_EPS = 1e-5      # PyTorch nn.LayerNorm default
NEG_INF = -1e30    # large finite negative (avoids NaN risk of -inf masking)


def _layernorm(x, g, b):
    mu = jnp.mean(x, axis=-1, keepdims=True)
    var = jnp.mean(jnp.square(x - mu), axis=-1, keepdims=True)
    return (x - mu) * jax.lax.rsqrt(var + LN_EPS) * g + b


# ----------------------------------------------------------------------------
# Fused kernel: all N transformer blocks + final LayerNorm.
# Grid: (B, N).  Axis 0 (batch) is parallel (megacore-shardable), axis 1
# (layers) is a sequential carry axis; the residual stream lives in a VMEM
# scratch across layer steps.
# ----------------------------------------------------------------------------
def blocks_kernel(x_ref, wqkv_ref, wp_ref, w1_ref, w2_ref, small_ref, b1_ref,
                  lnf_g_ref, lnf_b_ref, o_ref, h_carry, *, num_heads):
    layer = pl.program_id(1)

    @pl.when(layer == 0)
    def _():
        h_carry[...] = x_ref[0]                    # load residual stream (f32)

    x = h_carry[...]                               # (T, D) f32
    T, D = x.shape
    H = num_heads
    hs = D // H
    scale = 1.0 / float(hs) ** 0.5

    sp = small_ref[0]                              # (6, D) f32 packed params
    ln1_g, ln1_b = sp[0], sp[1]
    ln2_g, ln2_b = sp[2], sp[3]
    proj_b, b2 = sp[4], sp[5]

    # --- LN1 + fused QKV projection: one (T,D)@(D,3D) bf16 MXU matmul -------
    xn = _layernorm(x, ln1_g, ln1_b)
    qkv = jnp.dot(xn.astype(jnp.bfloat16), wqkv_ref[0],
                  preferred_element_type=jnp.float32)        # (T, 3D) f32

    # --- causal attention (scores / softmax in f32) --------------------------
    row = jax.lax.broadcasted_iota(jnp.int32, (T, T), 0)
    col = jax.lax.broadcasted_iota(jnp.int32, (T, T), 1)
    causal = row >= col

    # TODO(synk): for long sequences replace the materialized (T, T) scores
    # with a flash-style online-softmax tiled over (tq, tk).
    heads = []
    for h in range(H):                             # static unroll, H is small
        q = qkv[:, h * hs:(h + 1) * hs]
        k = qkv[:, D + h * hs:D + (h + 1) * hs]
        v = qkv[:, 2 * D + h * hs:2 * D + (h + 1) * hs]
        s = jnp.dot(q, k.T, preferred_element_type=jnp.float32) * scale
        s = jnp.where(causal, s, NEG_INF)
        s = s - jnp.max(s, axis=-1, keepdims=True)
        e = jnp.exp(s)
        w = e * pl.reciprocal(jnp.sum(e, axis=-1, keepdims=True), approx=True)
        heads.append(jnp.dot(w, v, preferred_element_type=jnp.float32))
    att = jnp.concatenate(heads, axis=-1)          # (T, H*hs) == (T, D)

    # --- single output projection over concatenated heads + residual 1 ------
    proj = jnp.dot(att.astype(jnp.bfloat16), wp_ref[0],
                   preferred_element_type=jnp.float32)
    x1 = x + proj + proj_b

    # --- LN2 + MLP + residual 2 ----------------------------------------------
    xn2 = _layernorm(x1, ln2_g, ln2_b)
    hmid = jnp.dot(xn2.astype(jnp.bfloat16), w1_ref[0],
                   preferred_element_type=jnp.float32) + b1_ref[0]
    hmid = jnp.maximum(hmid, 0.0)
    mlp = jnp.dot(hmid.astype(jnp.bfloat16), w2_ref[0],
                  preferred_element_type=jnp.float32) + b2
    x2 = x1 + mlp

    h_carry[...] = x2                              # carry to next layer step

    # final LayerNorm fused into the last layer step
    @pl.when(layer == pl.num_programs(1) - 1)
    def _():
        o_ref[0] = _layernorm(x2, lnf_g_ref[...],
                              lnf_b_ref[...]).astype(o_ref.dtype)


# ----------------------------------------------------------------------------
# LM head kernel, tiled over the (padded, 128-aligned) vocab dimension.
# Grid: (B, Vp // tile_v), both axes parallel.
# ----------------------------------------------------------------------------
def lm_head_kernel(x_ref, w_ref, b_ref, o_ref):
    o_ref[0] = (jnp.dot(x_ref[0], w_ref[...],
                        preferred_element_type=jnp.float32)
                + b_ref[...]).astype(o_ref.dtype)


# ----------------------------------------------------------------------------
# Wrappers
# ----------------------------------------------------------------------------
def run_blocks(x, packed, lnf_g, lnf_b, *, num_heads):
    B, T, D = x.shape
    N = packed["wqkv"].shape[0]
    kernel = functools.partial(blocks_kernel, num_heads=num_heads)
    return pl.pallas_call(
        kernel,
        out_shape=jax.ShapeDtypeStruct((B, T, D), jnp.bfloat16),
        grid=(B, N),
        in_specs=[
            pl.BlockSpec((1, T, D), lambda b, l: (b, 0, 0)),          # x
            pl.BlockSpec((1, D, 3 * D), lambda b, l: (l, 0, 0)),      # wqkv
            pl.BlockSpec((1, D, D), lambda b, l: (l, 0, 0)),          # wp
            pl.BlockSpec((1, D, 4 * D), lambda b, l: (l, 0, 0)),      # w1
            pl.BlockSpec((1, 4 * D, D), lambda b, l: (l, 0, 0)),      # w2
            pl.BlockSpec((1, 6, D), lambda b, l: (l, 0, 0)),          # small packed
            pl.BlockSpec((1, 1, 4 * D), lambda b, l: (l, 0, 0)),      # b1
            pl.BlockSpec((1, D), lambda b, l: (0, 0)),                # final ln_g
            pl.BlockSpec((1, D), lambda b, l: (0, 0)),                # final ln_b
        ],
        out_specs=pl.BlockSpec((1, T, D), lambda b, l: (b, 0, 0)),
        scratch_shapes=[pltpu.VMEM((T, D), jnp.float32)],   # residual carry
        compiler_params=pltpu.CompilerParams(
            dimension_semantics=("parallel", "arbitrary"),
            vmem_limit_bytes=64 * 1024 * 1024),
    )(x, packed["wqkv"], packed["wp"], packed["w1"], packed["w2"],
      packed["small"], packed["b1"], lnf_g, lnf_b)


def run_lm_head(xn, lm_w_pad, lm_b_pad, tile_v):
    B, T, D = xn.shape
    Vp = lm_w_pad.shape[1]
    return pl.pallas_call(
        lm_head_kernel,
        out_shape=jax.ShapeDtypeStruct((B, T, Vp), jnp.float32),
        grid=(B, Vp // tile_v),
        in_specs=[pl.BlockSpec((1, T, D), lambda b, j: (b, 0, 0)),
                  pl.BlockSpec((D, tile_v), lambda b, j: (0, j)),
                  pl.BlockSpec((1, tile_v), lambda b, j: (0, j))],
        out_specs=pl.BlockSpec((1, T, tile_v), lambda b, j: (b, 0, j)),
        compiler_params=pltpu.CompilerParams(
            dimension_semantics=("parallel", "parallel")),
    )(xn, lm_w_pad, lm_b_pad)


def pack_params(params):
    """Fuse/stack per-layer weights for the layer-fused kernel (bf16 matmul weights)."""
    D = params["tok_emb"].shape[1]
    blocks = params["blocks"]

    def fuse_qkv(bp):
        def flat(w):                                   # (H, D, hs) -> (D, H*hs)
            return jnp.transpose(w, (1, 0, 2)).reshape(D, -1)
        return jnp.concatenate([flat(bp["wq"]), flat(bp["wk"]), flat(bp["wv"])],
                               axis=1)                  # (D, 3*H*hs)

    return {
        "wqkv": jnp.stack([fuse_qkv(bp) for bp in blocks]).astype(jnp.bfloat16),
        "wp": jnp.stack([bp["wp"].reshape(-1, D)
                         for bp in blocks]).astype(jnp.bfloat16),   # (N, H*hs, D)
        "w1": jnp.stack([bp["w1"] for bp in blocks]).astype(jnp.bfloat16),
        "w2": jnp.stack([bp["w2"] for bp in blocks]).astype(jnp.bfloat16),
        "small": jnp.stack([jnp.concatenate(
            [bp["ln1_g"], bp["ln1_b"], bp["ln2_g"], bp["ln2_b"],
             bp["bp"], bp["b2"]], axis=0) for bp in blocks]),        # (N, 6, D) f32
        "b1": jnp.stack([bp["b1"] for bp in blocks]),                # (N, 1, 4D) f32
    }


def gpt2_forward(idx, params, *, num_heads, tile_v=128):
    """idx: int32 [B, T].  Returns logits [B, T, vocab_size] (f32)."""
    _, T = idx.shape
    D = params["tok_emb"].shape[1]
    V = params["lm_w"].shape[1]

    packed = pack_params(params)

    # vocab padded to a lane-dense multiple of the tile size
    Vp = ((V + tile_v - 1) // tile_v) * tile_v
    lm_w_pad = jnp.zeros((D, Vp), jnp.bfloat16).at[:, :V].set(
        params["lm_w"].astype(jnp.bfloat16))
    lm_b_pad = jnp.zeros((1, Vp), jnp.float32).at[:, :V].set(params["lm_b"])

    # Embedding gathers are glue (data-dependent indexing) -> plain JAX.
    x = jnp.take(params["tok_emb"], idx, axis=0) + params["pos_emb"][:T][None]

    xn = run_blocks(x, packed, params["ln_g"], params["ln_b"],
                    num_heads=num_heads)               # (B, T, D) bf16, post-LN
    logits = run_lm_head(xn, lm_w_pad, lm_b_pad, tile_v)
    return logits[:, :, :V]


# ----------------------------------------------------------------------------
# Pure-JAX reference (mirrors the kernel's bf16-matmul / f32-statistics policy)
# ----------------------------------------------------------------------------
def gpt2_reference(idx, params):
    bf16, f32 = jnp.bfloat16, jnp.float32

    def mm(a, b):
        return jnp.dot(a.astype(bf16), b.astype(bf16),
                       preferred_element_type=f32)

    _, T = idx.shape
    x = jnp.take(params["tok_emb"], idx, axis=0) + params["pos_emb"][:T][None]
    causal = jnp.tril(jnp.ones((T, T), bool))
    for bp in params["blocks"]:
        xn = _layernorm(x, bp["ln1_g"], bp["ln1_b"])
        H, _, hs = bp["wq"].shape
        heads = []
        for h in range(H):
            q = mm(xn, bp["wq"][h])
            k = mm(xn, bp["wk"][h])
            v = mm(xn, bp["wv"][h])
            s = jnp.einsum("btk,bsk->bts", q, k) / (float(hs) ** 0.5)
            s = jnp.where(causal, s, NEG_INF)
            w = jax.nn.softmax(s, axis=-1)
            heads.append(jnp.einsum("bts,bsk->btk", w, v))
        cat = jnp.concatenate(heads, axis=-1)                    # (B, T, H*hs)
        wp_flat = bp["wp"].reshape(-1, bp["wp"].shape[-1])
        x = x + mm(cat, wp_flat) + bp["bp"]
        xn2 = _layernorm(x, bp["ln2_g"], bp["ln2_b"])
        h1 = jnp.maximum(mm(xn2, bp["w1"]) + bp["b1"], 0.0)
        x = x + mm(h1, bp["w2"]) + bp["b2"]
    xn = _layernorm(x, params["ln_g"], params["ln_b"])
    return mm(xn, params["lm_w"]) + params["lm_b"]


# ----------------------------------------------------------------------------
# Deterministic parameter construction (natural, PyTorch-like layout, f32)
# ----------------------------------------------------------------------------
def init_params(key, *, vocab_size, d_model, block_size, n_layers, head_size, h):
    def nrm(k, shape, scale=0.02):
        return (scale * jax.random.normal(k, shape)).astype(jnp.float32)

    keys = iter(jax.random.split(key, 8 + n_layers * 16))
    params = {
        "tok_emb": nrm(next(keys), (vocab_size, d_model)),
        "pos_emb": nrm(next(keys), (block_size, d_model)),
        "ln_g": jnp.ones((1, d_model), jnp.float32),
        "ln_b": jnp.zeros((1, d_model), jnp.float32),
        "lm_w": nrm(next(keys), (d_model, vocab_size)),
        "lm_b": nrm(next(keys), (1, vocab_size)),
        "blocks": [],
    }
    for _ in range(n_layers):
        bp = {
            "ln1_g": jnp.ones((1, d_model), jnp.float32),
            "ln1_b": jnp.zeros((1, d_model), jnp.float32),
            "wq": nrm(next(keys), (h, d_model, head_size)),
            "wk": nrm(next(keys), (h, d_model, head_size)),
            "wv": nrm(next(keys), (h, d_model, head_size)),
            "wp": nrm(next(keys), (h, head_size, d_model)),
            "bp": nrm(next(keys), (1, d_model)),
            "ln2_g": jnp.ones((1, d_model), jnp.float32),
            "ln2_b": jnp.zeros((1, d_model), jnp.float32),
            "w1": nrm(next(keys), (d_model, 4 * d_model)),
            "b1": nrm(next(keys), (1, 4 * d_model)),
            "w2": nrm(next(keys), (4 * d_model, d_model)),
            "b2": nrm(next(keys), (1, d_model)),
        }
        params["blocks"].append(bp)
    return params


if __name__ == "__main__":
    # ModelDimensions: vocab_size=64, d_model=32, block_size=16, N=2,
    #                  head_size=8, h=4 (h*head_size == d_model), dropout=0.0
    V, D, BS, N, HS, H = 64, 32, 16, 2, 8, 4
    B, T = 2, 8  # seq length <= block_size

    root = jax.random.PRNGKey(0)
    k_params, k_idx = jax.random.split(root)
    params = init_params(k_params, vocab_size=V, d_model=D, block_size=BS,
                         n_layers=N, head_size=HS, h=H)
    idx = jax.random.randint(k_idx, (B, T), 0, V, dtype=jnp.int32)

    logits = gpt2_forward(idx, params, num_heads=H)
    logits = jax.block_until_ready(logits)
    assert logits.shape == (B, T, V), logits.shape

    ref = gpt2_reference(idx, params)
    np.testing.assert_allclose(np.asarray(logits), np.asarray(ref),
                               rtol=2e-2, atol=2e-2)
    print("KERNEL_OK")
</pallas_src>

<mosaic_0001>
module attributes {stable_mosaic.version = 11 : i64} {
  func.func @blocks_kernel(%arg0: i32, %arg1: i32, %arg2: memref<1x8x32xf32, #tpu.memory_space<vmem>>, %arg3: memref<1x32x96xbf16, #tpu.memory_space<vmem>>, %arg4: memref<1x32x32xbf16, #tpu.memory_space<vmem>>, %arg5: memref<1x32x128xbf16, #tpu.memory_space<vmem>>, %arg6: memref<1x128x32xbf16, #tpu.memory_space<vmem>>, %arg7: memref<1x6x32xf32, #tpu.memory_space<vmem>>, %arg8: memref<1x1x128xf32, #tpu.memory_space<vmem>>, %arg9: memref<1x32xf32, #tpu.memory_space<vmem>>, %arg10: memref<1x32xf32, #tpu.memory_space<vmem>>, %arg11: memref<1x8x32xbf16, #tpu.memory_space<vmem>>, %arg12: memref<8x32xf32, #tpu.memory_space<vmem>>) attributes {dimension_semantics = [#tpu.dimension_semantics<parallel>, #tpu.dimension_semantics<arbitrary>], iteration_bounds = array<i64: 2, 2>, scalar_prefetch = 0 : i64, scratch_operands = 1 : i64, tpu.core_type = #tpu.core_type<tc>, window_params = [{transform_indices = @transform_0, window_bounds = array<i64: 1, 8, 32>}, {transform_indices = @transform_1, window_bounds = array<i64: 1, 32, 96>}, {transform_indices = @transform_2, window_bounds = array<i64: 1, 32, 32>}, {transform_indices = @transform_3, window_bounds = array<i64: 1, 32, 128>}, {transform_indices = @transform_4, window_bounds = array<i64: 1, 128, 32>}, {transform_indices = @transform_5, window_bounds = array<i64: 1, 6, 32>}, {transform_indices = @transform_6, window_bounds = array<i64: 1, 1, 128>}, {pipeline_mode = #tpu.pipeline_mode<synchronous>, transform_indices = @transform_7, window_bounds = array<i64: 1, 32>}, {pipeline_mode = #tpu.pipeline_mode<synchronous>, transform_indices = @transform_8, window_bounds = array<i64: 1, 32>}, {transform_indices = @transform_9, window_bounds = array<i64: 1, 8, 32>}]} {
    %c0_i32 = arith.constant 0 : i32
    %0 = arith.cmpi eq, %arg1, %c0_i32 : i32
    %1 = arith.extui %0 : i1 to i32
    %c0_i32_0 = arith.constant 0 : i32
    %2 = arith.cmpi ne, %1, %c0_i32_0 : i32
    scf.if %2 {
      %c0_61 = arith.constant 0 : index
      %c0_62 = arith.constant 0 : index
      %c0_63 = arith.constant 0 : index
      %184 = vector.load %arg2[%c0_61, %c0_62, %c0_63] : memref<1x8x32xf32, #tpu.memory_space<vmem>>, vector<1x8x32xf32>
      %185 = vector.shape_cast %184 : vector<1x8x32xf32> to vector<8x32xf32>
      %c0_64 = arith.constant 0 : index
      %c0_65 = arith.constant 0 : index
      %186 = vector.load %arg12[%c0_64, %c0_65] : memref<8x32xf32, #tpu.memory_space<vmem>>, vector<8x32xf32>
      tpu.vector_store %arg12[%c0_64, %c0_65], %185 {strides = array<i32>} : memref<8x32xf32, #tpu.memory_space<vmem>>, vector<8x32xf32>,
    } else {
    }
    %c0 = arith.constant 0 : index
    %c0_1 = arith.constant 0 : index
    %3 = vector.load %arg12[%c0, %c0_1] : memref<8x32xf32, #tpu.memory_space<vmem>>, vector<8x32xf32>
    %c0_2 = arith.constant 0 : index
    %c0_3 = arith.constant 0 : index
    %c0_4 = arith.constant 0 : index
    %4 = vector.load %arg7[%c0_2, %c0_3, %c0_4] : memref<1x6x32xf32, #tpu.memory_space<vmem>>, vector<1x6x32xf32>
    %5 = vector.shape_cast %4 : vector<1x6x32xf32> to vector<6x32xf32>
    %6 = vector.extract_strided_slice %5 {offsets = [0, 0], sizes = [1, 32], strides = [1, 1]} : vector<6x32xf32> to vector<1x32xf32>
    %7 = vector.shape_cast %6 : vector<1x32xf32> to vector<32xf32>
    %8 = vector.extract_strided_slice %5 {offsets = [1, 0], sizes = [1, 32], strides = [1, 1]} : vector<6x32xf32> to vector<1x32xf32>
    %9 = vector.shape_cast %8 : vector<1x32xf32> to vector<32xf32>
    %10 = vector.extract_strided_slice %5 {offsets = [2, 0], sizes = [1, 32], strides = [1, 1]} : vector<6x32xf32> to vector<1x32xf32>
    %11 = vector.shape_cast %10 : vector<1x32xf32> to vector<32xf32>
    %12 = vector.extract_strided_slice %5 {offsets = [3, 0], sizes = [1, 32], strides = [1, 1]} : vector<6x32xf32> to vector<1x32xf32>
    %13 = vector.shape_cast %12 : vector<1x32xf32> to vector<32xf32>
    %14 = vector.extract_strided_slice %5 {offsets = [4, 0], sizes = [1, 32], strides = [1, 1]} : vector<6x32xf32> to vector<1x32xf32>
    %15 = vector.shape_cast %14 : vector<1x32xf32> to vector<32xf32>
    %16 = vector.extract_strided_slice %5 {offsets = [5, 0], sizes = [1, 32], strides = [1, 1]} : vector<6x32xf32> to vector<1x32xf32>
    %17 = vector.shape_cast %16 : vector<1x32xf32> to vector<32xf32>
    %cst = arith.constant dense<0.000000e+00> : vector<8xf32>
    %18 = vector.multi_reduction <add>, %3, %cst [1] : vector<8x32xf32> to vector<8xf32>
    %19 = vector.shape_cast %18 : vector<8xf32> to vector<8x1xf32>
    %cst_5 = arith.constant 3.200000e+01 : f32
    %20 = vector.broadcast %cst_5 : f32 to vector<8x1xf32>
    %21 = arith.divf %19, %20 : vector<8x1xf32>
    %22 = vector.broadcast %21 : vector<8x1xf32> to vector<8x32xf32>
    %23 = arith.subf %3, %22 : vector<8x32xf32>
    %24 = arith.mulf %23, %23 : vector<8x32xf32>
    %cst_6 = arith.constant dense<0.000000e+00> : vector<8xf32>
    %25 = vector.multi_reduction <add>, %24, %cst_6 [1] : vector<8x32xf32> to vector<8xf32>
    %26 = vector.shape_cast %25 : vector<8xf32> to vector<8x1xf32>
    %cst_7 = arith.constant 3.200000e+01 : f32
    %27 = vector.broadcast %cst_7 : f32 to vector<8x1xf32>
    %28 = arith.divf %26, %27 : vector<8x1xf32>
    %29 = vector.broadcast %21 : vector<8x1xf32> to vector<8x32xf32>
    %30 = arith.subf %3, %29 : vector<8x32xf32>
    %cst_8 = arith.constant 9.99999974E-6 : f32
    %31 = vector.broadcast %cst_8 : f32 to vector<8x1xf32>
    %32 = arith.addf %28, %31 : vector<8x1xf32>
    %33 = math.rsqrt %32 : vector<8x1xf32>
    %34 = vector.broadcast %33 : vector<8x1xf32> to vector<8x32xf32>
    %35 = arith.mulf %30, %34 : vector<8x32xf32>
    %36 = vector.shape_cast %7 : vector<32xf32> to vector<1x32xf32>
    %37 = vector.broadcast %36 : vector<1x32xf32> to vector<8x32xf32>
    %38 = arith.mulf %35, %37 : vector<8x32xf32>
    %39 = vector.shape_cast %9 : vector<32xf32> to vector<1x32xf32>
    %40 = vector.broadcast %39 : vector<1x32xf32> to vector<8x32xf32>
    %41 = arith.addf %38, %40 : vector<8x32xf32>
    %42 = arith.truncf %41 : vector<8x32xf32> to vector<8x32xbf16>
    %c0_9 = arith.constant 0 : index
    %c0_10 = arith.constant 0 : index
    %c0_11 = arith.constant 0 : index
    %43 = vector.load %arg3[%c0_9, %c0_10, %c0_11] : memref<1x32x96xbf16, #tpu.memory_space<vmem>>, vector<1x32x96xbf16>
    %44 = vector.shape_cast %43 : vector<1x32x96xbf16> to vector<32x96xbf16>
    %cst_12 = arith.constant dense<0.000000e+00> : vector<8x96xf32>
    %45 = tpu.matmul %42, %44, %cst_12 {dimension_numbers = #tpu.dot_dimension_numbers<[1], [0], [0], [1], [0, 0, 1, 1], [], []>} : vector<8x32xbf16>, vector<32x96xbf16>, vector<8x96xf32> -> vector<8x96xf32>
    %46 = tpu.iota {dimensions = array<i32: 0>} : vector<8x8xi32>
    %47 = tpu.iota {dimensions = array<i32: 1>} : vector<8x8xi32>
    %48 = arith.cmpi sge, %46, %47 : vector<8x8xi32>
    %49 = vector.extract_strided_slice %45 {offsets = [0, 0], sizes = [8, 8], strides = [1, 1]} : vector<8x96xf32> to vector<8x8xf32>
    %50 = vector.extract_strided_slice %45 {offsets = [0, 32], sizes = [8, 8], strides = [1, 1]} : vector<8x96xf32> to vector<8x8xf32>
    %51 = vector.extract_strided_slice %45 {offsets = [0, 64], sizes = [8, 8], strides = [1, 1]} : vector<8x96xf32> to vector<8x8xf32>
    %52 = tpu.transpose %50, [1, 0] : vector<8x8xf32> -> vector<8x8xf32>
    %cst_13 = arith.constant dense<0.000000e+00> : vector<8x8xf32>
    %53 = tpu.matmul %49, %52, %cst_13 {dimension_numbers = #tpu.dot_dimension_numbers<[1], [0], [0], [1], [0, 0, 1, 1], [], []>} : vector<8x8xf32>, vector<8x8xf32>, vector<8x8xf32> -> vector<8x8xf32>
    %cst_14 = arith.constant 0.353553385 : f32
    %54 = vector.broadcast %cst_14 : f32 to vector<8x8xf32>
    %55 = arith.mulf %53, %54 : vector<8x8xf32>
    %cst_15 = arith.constant -1.000000e+30 : f32
    %56 = vector.broadcast %cst_15 : f32 to vector<8x8xf32>
    %57 = arith.select %48, %55, %56 : vector<8x8xi1>, vector<8x8xf32>
    %cst_16 = arith.constant dense<0xFF800000> : vector<8xf32>
    %58 = vector.multi_reduction <maximumf>, %57, %cst_16 [1] : vector<8x8xf32> to vector<8xf32>
    %59 = vector.shape_cast %58 : vector<8xf32> to vector<8x1xf32>
    %60 = vector.broadcast %59 : vector<8x1xf32> to vector<8x8xf32>
    %61 = arith.subf %57, %60 : vector<8x8xf32>
    %62 = math.exp %61 : vector<8x8xf32>
    %cst_17 = arith.constant dense<0.000000e+00> : vector<8xf32>
    %63 = vector.multi_reduction <add>, %62, %cst_17 [1] : vector<8x8xf32> to vector<8xf32>
    %64 = vector.shape_cast %63 : vector<8xf32> to vector<8x1xf32>
    %65 = tpu.reciprocal %64 {approx = true} : vector<8x1xf32> -> vector<8x1xf32>
    %66 = vector.broadcast %65 : vector<8x1xf32> to vector<8x8xf32>
    %67 = arith.mulf %62, %66 : vector<8x8xf32>
    %cst_18 = arith.constant dense<0.000000e+00> : vector<8x8xf32>
    %68 = tpu.matmul %67, %51, %cst_18 {dimension_numbers = #tpu.dot_dimension_numbers<[1], [0], [0], [1], [0, 0, 1, 1], [], []>} : vector<8x8xf32>, vector<8x8xf32>, vector<8x8xf32> -> vector<8x8xf32>
    %69 = vector.extract_strided_slice %45 {offsets = [0, 8], sizes = [8, 8], strides = [1, 1]} : vector<8x96xf32> to vector<8x8xf32>
    %70 = vector.extract_strided_slice %45 {offsets = [0, 40], sizes = [8, 8], strides = [1, 1]} : vector<8x96xf32> to vector<8x8xf32>
    %71 = vector.extract_strided_slice %45 {offsets = [0, 72], sizes = [8, 8], strides = [1, 1]} : vector<8x96xf32> to vector<8x8xf32>
    %72 = tpu.transpose %70, [1, 0] : vector<8x8xf32> -> vector<8x8xf32>
    %cst_19 = arith.constant dense<0.000000e+00> : vector<8x8xf32>
    %73 = tpu.matmul %69, %72, %cst_19 {dimension_numbers = #tpu.dot_dimension_numbers<[1], [0], [0], [1], [0, 0, 1, 1], [], []>} : vector<8x8xf32>, vector<8x8xf32>, vector<8x8xf32> -> vector<8x8xf32>
    %cst_20 = arith.constant 0.353553385 : f32
    %74 = vector.broadcast %cst_20 : f32 to vector<8x8xf32>
    %75 = arith.mulf %73, %74 : vector<8x8xf32>
    %cst_21 = arith.constant -1.000000e+30 : f32
    %76 = vector.broadcast %cst_21 : f32 to vector<8x8xf32>
    %77 = arith.select %48, %75, %76 : vector<8x8xi1>, vector<8x8xf32>
    %cst_22 = arith.constant dense<0xFF800000> : vector<8xf32>
    %78 = vector.multi_reduction <maximumf>, %77, %cst_22 [1] : vector<8x8xf32> to vector<8xf32>
    %79 = vector.shape_cast %78 : vector<8xf32> to vector<8x1xf32>
    %80 = vector.broadcast %79 : vector<8x1xf32> to vector<8x8xf32>
    %81 = arith.subf %77, %80 : vector<8x8xf32>
    %82 = math.exp %81 : vector<8x8xf32>
    %cst_23 = arith.constant dense<0.000000e+00> : vector<8xf32>
    %83 = vector.multi_reduction <add>, %82, %cst_23 [1] : vector<8x8xf32> to vector<8xf32>
    %84 = vector.shape_cast %83 : vector<8xf32> to vector<8x1xf32>
    %85 = tpu.reciprocal %84 {approx = true} : vector<8x1xf32> -> vector<8x1xf32>
    %86 = vector.broadcast %85 : vector<8x1xf32> to vector<8x8xf32>
    %87 = arith.mulf %82, %86 : vector<8x8xf32>
    %cst_24 = arith.constant dense<0.000000e+00> : vector<8x8xf32>
    %88 = tpu.matmul %87, %71, %cst_24 {dimension_numbers = #tpu.dot_dimension_numbers<[1], [0], [0], [1], [0, 0, 1, 1], [], []>} : vector<8x8xf32>, vector<8x8xf32>, vector<8x8xf32> -> vector<8x8xf32>
    %89 = vector.extract_strided_slice %45 {offsets = [0, 16], sizes = [8, 8], strides = [1, 1]} : vector<8x96xf32> to vector<8x8xf32>
    %90 = vector.extract_strided_slice %45 {offsets = [0, 48], sizes = [8, 8], strides = [1, 1]} : vector<8x96xf32> to vector<8x8xf32>
    %91 = vector.extract_strided_slice %45 {offsets = [0, 80], sizes = [8, 8], strides = [1, 1]} : vector<8x96xf32> to vector<8x8xf32>
    %92 = tpu.transpose %90, [1, 0] : vector<8x8xf32> -> vector<8x8xf32>
    %cst_25 = arith.constant dense<0.000000e+00> : vector<8x8xf32>
    %93 = tpu.matmul %89, %92, %cst_25 {dimension_numbers = #tpu.dot_dimension_numbers<[1], [0], [0], [1], [0, 0, 1, 1], [], []>} : vector<8x8xf32>, vector<8x8xf32>, vector<8x8xf32> -> vector<8x8xf32>
    %cst_26 = arith.constant 0.353553385 : f32
    %94 = vector.broadcast %cst_26 : f32 to vector<8x8xf32>
    %95 = arith.mulf %93, %94 : vector<8x8xf32>
    %cst_27 = arith.constant -1.000000e+30 : f32
    %96 = vector.broadcast %cst_27 : f32 to vector<8x8xf32>
    %97 = arith.select %48, %95, %96 : vector<8x8xi1>, vector<8x8xf32>
    %cst_28 = arith.constant dense<0xFF800000> : vector<8xf32>
    %98 = vector.multi_reduction <maximumf>, %97, %cst_28 [1] : vector<8x8xf32> to vector<8xf32>
    %99 = vector.shape_cast %98 : vector<8xf32> to vector<8x1xf32>
    %100 = vector.broadcast %99 : vector<8x1xf32> to vector<8x8xf32>
    %101 = arith.subf %97, %100 : vector<8x8xf32>
    %102 = math.exp %101 : vector<8x8xf32>
    %cst_29 = arith.constant dense<0.000000e+00> : vector<8xf32>
    %103 = vector.multi_reduction <add>, %102, %cst_29 [1] : vector<8x8xf32> to vector<8xf32>
    %104 = vector.shape_cast %103 : vector<8xf32> to vector<8x1xf32>
    %105 = tpu.reciprocal %104 {approx = true} : vector<8x1xf32> -> vector<8x1xf32>
    %106 = vector.broadcast %105 : vector<8x1xf32> to vector<8x8xf32>
    %107 = arith.mulf %102, %106 : vector<8x8xf32>
    %cst_30 = arith.constant dense<0.000000e+00> : vector<8x8xf32>
    %108 = tpu.matmul %107, %91, %cst_30 {dimension_numbers = #tpu.dot_dimension_numbers<[1], [0], [0], [1], [0, 0, 1, 1], [], []>} : vector<8x8xf32>, vector<8x8xf32>, vector<8x8xf32> -> vector<8x8xf32>
    %109 = vector.extract_strided_slice %45 {offsets = [0, 24], sizes = [8, 8], strides = [1, 1]} : vector<8x96xf32> to vector<8x8xf32>
    %110 = vector.extract_strided_slice %45 {offsets = [0, 56], sizes = [8, 8], strides = [1, 1]} : vector<8x96xf32> to vector<8x8xf32>
    %111 = vector.extract_strided_slice %45 {offsets = [0, 88], sizes = [8, 8], strides = [1, 1]} : vector<8x96xf32> to vector<8x8xf32>
    %112 = tpu.transpose %110, [1, 0] : vector<8x8xf32> -> vector<8x8xf32>
    %cst_31 = arith.constant dense<0.000000e+00> : vector<8x8xf32>
    %113 = tpu.matmul %109, %112, %cst_31 {dimension_numbers = #tpu.dot_dimension_numbers<[1], [0], [0], [1], [0, 0, 1, 1], [], []>} : vector<8x8xf32>, vector<8x8xf32>, vector<8x8xf32> -> vector<8x8xf32>
    %cst_32 = arith.constant 0.353553385 : f32
    %114 = vector.broadcast %cst_32 : f32 to vector<8x8xf32>
    %115 = arith.mulf %113, %114 : vector<8x8xf32>
    %cst_33 = arith.constant -1.000000e+30 : f32
    %116 = vector.broadcast %cst_33 : f32 to vector<8x8xf32>
    %117 = arith.select %48, %115, %116 : vector<8x8xi1>, vector<8x8xf32>
    %cst_34 = arith.constant dense<0xFF800000> : vector<8xf32>
    %118 = vector.multi_reduction <maximumf>, %117, %cst_34 [1] : vector<8x8xf32> to vector<8xf32>
    %119 = vector.shape_cast %118 : vector<8xf32> to vector<8x1xf32>
    %120 = vector.broadcast %119 : vector<8x1xf32> to vector<8x8xf32>
    %121 = arith.subf %117, %120 : vector<8x8xf32>
    %122 = math.exp %121 : vector<8x8xf32>
    %cst_35 = arith.constant dense<0.000000e+00> : vector<8xf32>
    %123 = vector.multi_reduction <add>, %122, %cst_35 [1] : vector<8x8xf32> to vector<8xf32>
    %124 = vector.shape_cast %123 : vector<8xf32> to vector<8x1xf32>
    %125 = tpu.reciprocal %124 {approx = true} : vector<8x1xf32> -> vector<8x1xf32>
    %126 = vector.broadcast %125 : vector<8x1xf32> to vector<8x8xf32>
    %127 = arith.mulf %122, %126 : vector<8x8xf32>
    %cst_36 = arith.constant dense<0.000000e+00> : vector<8x8xf32>
    %128 = tpu.matmul %127, %111, %cst_36 {dimension_numbers = #tpu.dot_dimension_numbers<[1], [0], [0], [1], [0, 0, 1, 1], [], []>} : vector<8x8xf32>, vector<8x8xf32>, vector<8x8xf32> -> vector<8x8xf32>
    %129 = tpu.concatenate %68, %88, %108, %128 in 1 : vector<8x8xf32>, vector<8x8xf32>, vector<8x8xf32>, vector<8x8xf32> -> vector<8x32xf32>
    %130 = arith.truncf %129 : vector<8x32xf32> to vector<8x32xbf16>
    %c0_37 = arith.constant 0 : index
    %c0_38 = arith.constant 0 : index
    %c0_39 = arith.constant 0 : index
    %131 = vector.load %arg4[%c0_37, %c0_38, %c0_39] : memref<1x32x32xbf16, #tpu.memory_space<vmem>>, vector<1x32x32xbf16>
    %132 = vector.shape_cast %131 : vector<1x32x32xbf16> to vector<32x32xbf16>
    %cst_40 = arith.constant dense<0.000000e+00> : vector<8x32xf32>
    %133 = tpu.matmul %130, %132, %cst_40 {dimension_numbers = #tpu.dot_dimension_numbers<[1], [0], [0], [1], [0, 0, 1, 1], [], []>} : vector<8x32xbf16>, vector<32x32xbf16>, vector<8x32xf32> -> vector<8x32xf32>
    %134 = arith.addf %3, %133 : vector<8x32xf32>
    %135 = vector.shape_cast %15 : vector<32xf32> to vector<1x32xf32>
    %136 = vector.broadcast %135 : vector<1x32xf32> to vector<8x32xf32>
    %137 = arith.addf %134, %136 : vector<8x32xf32>
    %cst_41 = arith.constant dense<0.000000e+00> : vector<8xf32>
    %138 = vector.multi_reduction <add>, %137, %cst_41 [1] : vector<8x32xf32> to vector<8xf32>
    %139 = vector.shape_cast %138 : vector<8xf32> to vector<8x1xf32>
    %cst_42 = arith.constant 3.200000e+01 : f32
    %140 = vector.broadcast %cst_42 : f32 to vector<8x1xf32>
    %141 = arith.divf %139, %140 : vector<8x1xf32>
    %142 = vector.broadcast %141 : vector<8x1xf32> to vector<8x32xf32>
    %143 = arith.subf %137, %142 : vector<8x32xf32>
    %144 = arith.mulf %143, %143 : vector<8x32xf32>
    %cst_43 = arith.constant dense<0.000000e+00> : vector<8xf32>
    %145 = vector.multi_reduction <add>, %144, %cst_43 [1] : vector<8x32xf32> to vector<8xf32>
    %146 = vector.shape_cast %145 : vector<8xf32> to vector<8x1xf32>
    %cst_44 = arith.constant 3.200000e+01 : f32
    %147 = vector.broadcast %cst_44 : f32 to vector<8x1xf32>
    %148 = arith.divf %146, %147 : vector<8x1xf32>
    %149 = vector.broadcast %141 : vector<8x1xf32> to vector<8x32xf32>
    %150 = arith.subf %137, %149 : vector<8x32xf32>
    %cst_45 = arith.constant 9.99999974E-6 : f32
    %151 = vector.broadcast %cst_45 : f32 to vector<8x1xf32>
    %152 = arith.addf %148, %151 : vector<8x1xf32>
    %153 = math.rsqrt %152 : vector<8x1xf32>
    %154 = vector.broadcast %153 : vector<8x1xf32> to vector<8x32xf32>
    %155 = arith.mulf %150, %154 : vector<8x32xf32>
    %156 = vector.shape_cast %11 : vector<32xf32> to vector<1x32xf32>
    %157 = vector.broadcast %156 : vector<1x32xf32> to vector<8x32xf32>
    %158 = arith.mulf %155, %157 : vector<8x32xf32>
    %159 = vector.shape_cast %13 : vector<32xf32> to vector<1x32xf32>
    %160 = vector.broadcast %159 : vector<1x32xf32> to vector<8x32xf32>
    %161 = arith.addf %158, %160 : vector<8x32xf32>
    %162 = arith.truncf %161 : vector<8x32xf32> to vector<8x32xbf16>
    %c0_46 = arith.constant 0 : index
    %c0_47 = arith.constant 0 : index
    %c0_48 = arith.constant 0 : index
    %163 = vector.load %arg5[%c0_46, %c0_47, %c0_48] : memref<1x32x128xbf16, #tpu.memory_space<vmem>>, vector<1x32x128xbf16>
    %164 = vector.shape_cast %163 : vector<1x32x128xbf16> to vector<32x128xbf16>
    %cst_49 = arith.constant dense<0.000000e+00> : vector<8x128xf32>
    %165 = tpu.matmul %162, %164, %cst_49 {dimension_numbers = #tpu.dot_dimension_numbers<[1], [0], [0], [1], [0, 0, 1, 1], [], []>} : vector<8x32xbf16>, vector<32x128xbf16>, vector<8x128xf32> -> vector<8x128xf32>
    %c0_50 = arith.constant 0 : index
    %c0_51 = arith.constant 0 : index
    %c0_52 = arith.constant 0 : index
    %166 = vector.load %arg8[%c0_50, %c0_51, %c0_52] : memref<1x1x128xf32, #tpu.memory_space<vmem>>, vector<1x1x128xf32>
    %167 = vector.shape_cast %166 : vector<1x1x128xf32> to vector<1x128xf32>
    %168 = vector.broadcast %167 : vector<1x128xf32> to vector<8x128xf32>
    %169 = arith.addf %165, %168 : vector<8x128xf32>
    %cst_53 = arith.constant 0.000000e+00 : f32
    %170 = vector.broadcast %cst_53 : f32 to vector<8x128xf32>
    %171 = arith.maximumf %169, %170 : vector<8x128xf32>
    %172 = arith.truncf %171 : vector<8x128xf32> to vector<8x128xbf16>
    %c0_54 = arith.constant 0 : index
    %c0_55 = arith.constant 0 : index
    %c0_56 = arith.constant 0 : index
    %173 = vector.load %arg6[%c0_54, %c0_55, %c0_56] : memref<1x128x32xbf16, #tpu.memory_space<vmem>>, vector<1x128x32xbf16>
    %174 = vector.shape_cast %173 : vector<1x128x32xbf16> to vector<128x32xbf16>
    %cst_57 = arith.constant dense<0.000000e+00> : vector<8x32xf32>
    %175 = tpu.matmul %172, %174, %cst_57 {dimension_numbers = #tpu.dot_dimension_numbers<[1], [0], [0], [1], [0, 0, 1, 1], [], []>} : vector<8x128xbf16>, vector<128x32xbf16>, vector<8x32xf32> -> vector<8x32xf32>
    %176 = vector.shape_cast %17 : vector<32xf32> to vector<1x32xf32>
    %177 = vector.broadcast %176 : vector<1x32xf32> to vector<8x32xf32>
    %178 = arith.addf %175, %177 : vector<8x32xf32>
    %179 = arith.addf %137, %178 : vector<8x32xf32>
    %c0_58 = arith.constant 0 : index
    %c0_59 = arith.constant 0 : index
    %180 = vector.load %arg12[%c0_58, %c0_59] : memref<8x32xf32, #tpu.memory_space<vmem>>, vector<8x32xf32>
    tpu.vector_store %arg12[%c0_58, %c0_59], %179 {strides = array<i32>} : memref<8x32xf32, #tpu.memory_space<vmem>>, vector<8x32xf32>,
    %c1_i32 = arith.constant 1 : i32
    %181 = arith.cmpi eq, %arg1, %c1_i32 : i32
    %182 = arith.extui %181 : i1 to i32
    %c0_i32_60 = arith.constant 0 : i32
    %183 = arith.cmpi ne, %182, %c0_i32_60 : i32
    scf.if %183 {
      %c0_61 = arith.constant 0 : index
      %c0_62 = arith.constant 0 : index
      %184 = vector.load %arg9[%c0_61, %c0_62] : memref<1x32xf32, #tpu.memory_space<vmem>>, vector<1x32xf32>
      %c0_63 = arith.constant 0 : index
      %c0_64 = arith.constant 0 : index
      %185 = vector.load %arg10[%c0_63, %c0_64] : memref<1x32xf32, #tpu.memory_space<vmem>>, vector<1x32xf32>
      %cst_65 = arith.constant dense<0.000000e+00> : vector<8xf32>
      %186 = vector.multi_reduction <add>, %179, %cst_65 [1] : vector<8x32xf32> to vector<8xf32>
      %187 = vector.shape_cast %186 : vector<8xf32> to vector<8x1xf32>
      %cst_66 = arith.constant 3.200000e+01 : f32
      %188 = vector.broadcast %cst_66 : f32 to vector<8x1xf32>
      %189 = arith.divf %187, %188 : vector<8x1xf32>
      %190 = vector.broadcast %189 : vector<8x1xf32> to vector<8x32xf32>
      %191 = arith.subf %179, %190 : vector<8x32xf32>
      %192 = arith.mulf %191, %191 : vector<8x32xf32>
      %cst_67 = arith.constant dense<0.000000e+00> : vector<8xf32>
      %193 = vector.multi_reduction <add>, %192, %cst_67 [1] : vector<8x32xf32> to vector<8xf32>
      %194 = vector.shape_cast %193 : vector<8xf32> to vector<8x1xf32>
      %cst_68 = arith.constant 3.200000e+01 : f32
      %195 = vector.broadcast %cst_68 : f32 to vector<8x1xf32>
      %196 = arith.divf %194, %195 : vector<8x1xf32>
      %197 = vector.broadcast %189 : vector<8x1xf32> to vector<8x32xf32>
      %198 = arith.subf %179, %197 : vector<8x32xf32>
      %cst_69 = arith.constant 9.99999974E-6 : f32
      %199 = vector.broadcast %cst_69 : f32 to vector<8x1xf32>
      %200 = arith.addf %196, %199 : vector<8x1xf32>
      %201 = math.rsqrt %200 : vector<8x1xf32>
      %202 = vector.broadcast %201 : vector<8x1xf32> to vector<8x32xf32>
      %203 = arith.mulf %198, %202 : vector<8x32xf32>
      %204 = vector.broadcast %184 : vector<1x32xf32> to vector<8x32xf32>
      %205 = arith.mulf %203, %204 : vector<8x32xf32>
      %206 = vector.broadcast %185 : vector<1x32xf32> to vector<8x32xf32>
      %207 = arith.addf %205, %206 : vector<8x32xf32>
      %208 = arith.truncf %207 : vector<8x32xf32> to vector<8x32xbf16>
      %c0_70 = arith.constant 0 : index
      %c0_71 = arith.constant 0 : index
      %c0_72 = arith.constant 0 : index
      %209 = vector.load %arg11[%c0_70, %c0_71, %c0_72] : memref<1x8x32xbf16, #tpu.memory_space<vmem>>, vector<1x8x32xbf16>
      %210 = vector.shape_cast %209 : vector<1x8x32xbf16> to vector<8x32xbf16>
      %211 = vector.shape_cast %208 : vector<8x32xbf16> to vector<1x8x32xbf16>
      tpu.vector_store %arg11[%c0_70, %c0_71, %c0_72], %211 {strides = array<i32>} : memref<1x8x32xbf16, #tpu.memory_space<vmem>>, vector<1x8x32xbf16>,
    } else {
    }
    return
  }
  func.func @transform_0(%arg0: i32, %arg1: i32) -> (i32, i32, i32) {
    %c0_i32 = arith.constant 0 : i32
    %c0_i32_0 = arith.constant 0 : i32
    %c0_i32_1 = arith.constant 0 : i32
    return %arg0, %c0_i32, %c0_i32_0 : i32, i32, i32
  }
  func.func @transform_1(%arg0: i32, %arg1: i32) -> (i32, i32, i32) {
    %c0_i32 = arith.constant 0 : i32
    %c0_i32_0 = arith.constant 0 : i32
    %c0_i32_1 = arith.constant 0 : i32
    return %arg1, %c0_i32, %c0_i32_0 : i32, i32, i32
  }
  func.func @transform_2(%arg0: i32, %arg1: i32) -> (i32, i32, i32) {
    %c0_i32 = arith.constant 0 : i32
    %c0_i32_0 = arith.constant 0 : i32
    %c0_i32_1 = arith.constant 0 : i32
    return %arg1, %c0_i32, %c0_i32_0 : i32, i32, i32
  }
  func.func @transform_3(%arg0: i32, %arg1: i32) -> (i32, i32, i32) {
    %c0_i32 = arith.constant 0 : i32
    %c0_i32_0 = arith.constant 0 : i32
    %c0_i32_1 = arith.constant 0 : i32
    return %arg1, %c0_i32, %c0_i32_0 : i32, i32, i32
  }
  func.func @transform_4(%arg0: i32, %arg1: i32) -> (i32, i32, i32) {
    %c0_i32 = arith.constant 0 : i32
    %c0_i32_0 = arith.constant 0 : i32
    %c0_i32_1 = arith.constant 0 : i32
    return %arg1, %c0_i32, %c0_i32_0 : i32, i32, i32
  }
  func.func @transform_5(%arg0: i32, %arg1: i32) -> (i32, i32, i32) {
    %c0_i32 = arith.constant 0 : i32
    %c0_i32_0 = arith.constant 0 : i32
    %c0_i32_1 = arith.constant 0 : i32
    return %arg1, %c0_i32, %c0_i32_0 : i32, i32, i32
  }
  func.func @transform_6(%arg0: i32, %arg1: i32) -> (i32, i32, i32) {
    %c0_i32 = arith.constant 0 : i32
    %c0_i32_0 = arith.constant 0 : i32
    %c0_i32_1 = arith.constant 0 : i32
    return %arg1, %c0_i32, %c0_i32_0 : i32, i32, i32
  }
  func.func @transform_7(%arg0: i32, %arg1: i32) -> (i32, i32) {
    %c0_i32 = arith.constant 0 : i32
    %c0_i32_0 = arith.constant 0 : i32
    %c0_i32_1 = arith.constant 0 : i32
    return %c0_i32, %c0_i32_0 : i32, i32
  }
  func.func @transform_8(%arg0: i32, %arg1: i32) -> (i32, i32) {
    %c0_i32 = arith.constant 0 : i32
    %c0_i32_0 = arith.constant 0 : i32
    %c0_i32_1 = arith.constant 0 : i32
    return %c0_i32, %c0_i32_0 : i32, i32
  }
  func.func @transform_9(%arg0: i32, %arg1: i32) -> (i32, i32, i32) {
    %c0_i32 = arith.constant 0 : i32
    %c0_i32_0 = arith.constant 0 : i32
    %c0_i32_1 = arith.constant 0 : i32
    return %arg0, %c0_i32, %c0_i32_0 : i32, i32, i32
  }
}

</mosaic_0001>

<llo_original>
// kernel: tpu_custom_call.1
$region0: #{tpu_custom_call.1}
  #allocation0 [shape = 'u32[]', space=smem, size = 0x4, offset = 0x4, fixed_abs, tag = 'smem constant byte address 0x4 - core index']
  #allocation1 [shape = 'u32[144,128]{1,0:T(1,128)}', space=vmem, size = 0x12000, scoped, tag = 'internal scratch']
  #allocation2 [shape = 'f32[8,32]{1,0:T(8,128)}', space=vmem, size = 0x1000, scoped, tag = 'scratch operand']
  %s0 = inlined_call_operand.hbm [shape: f32[2,8,32], index: 0, kind: input, shape index: {}]
  %s1 = inlined_call_operand.hbm [shape: bf16[2,32,96], index: 1, kind: input, shape index: {}]
  %s2 = inlined_call_operand.hbm [shape: bf16[2,32,32], index: 2, kind: input, shape index: {}]
  %s3 = inlined_call_operand.hbm [shape: bf16[2,32,128], index: 3, kind: input, shape index: {}]
  %s4 = inlined_call_operand.hbm [shape: bf16[2,128,32], index: 4, kind: input, shape index: {}]
  %s5 = inlined_call_operand.hbm [shape: f32[2,6,32], index: 5, kind: input, shape index: {}]
  %s6 = inlined_call_operand.hbm [shape: f32[2,1,128], index: 6, kind: input, shape index: {}]
  %s7 = inlined_call_operand.hbm [shape: f32[1,32], index: 7, kind: input, shape index: {}]
  %s8 = inlined_call_operand.hbm [shape: f32[1,32], index: 8, kind: input, shape index: {}]
  %s9 = inlined_call_operand.hbm [shape: bf16[2,8,32], index: 9, kind: output, shape index: {}]
  %s10 = sld [smem:[#allocation0]]
  $region113: #{tpu_custom_call.1} parent=0
    _
  %s12 = ssub.s32 1, %s10
  %s13 = scalar_select 0, %s12, %s10
  $region1: #{tpu_custom_call.1} parent=0
    #allocation3 [shape = 'u8[8192]{0}', space=vmem, size = 0x2000, scoped, tag = 'input window, operand 0']
    #allocation4 [shape = 's32[2]{0}', space=sflag, size = 0x8, scoped, tag = 'scoped memory for tpu_custom_call.1']
    #allocation5 [shape = 's32[2]{0}', space=sflag, size = 0x8, scoped, tag = 'scoped memory for tpu_custom_call.1']
    #allocation6 [shape = 'u8[16384]{0}', space=vmem, size = 0x4000, scoped, tag = 'input window, operand 1']
    #allocation7 [shape = 's32[2]{0}', space=sflag, size = 0x8, scoped, tag = 'scoped memory for tpu_custom_call.1']
    #allocation8 [shape = 'u8[16384]{0}', space=vmem, size = 0x4000, scoped, tag = 'input window, operand 2']
    #allocation9 [shape = 'u8[16384]{0}', space=vmem, size = 0x4000, scoped, tag = 'input window, operand 3']
    #allocation10 [shape = 's32[2]{0}', space=sflag, size = 0x8, scoped, tag = 'scoped memory for tpu_custom_call.1']
    #allocation11 [shape = 'u8[65536]{0}', space=vmem, size = 0x10000, scoped, tag = 'input window, operand 4']
    #allocation12 [shape = 'u8[8192]{0}', space=vmem, size = 0x2000, scoped, tag = 'input window, operand 5']
    #allocation13 [shape = 's32[2]{0}', space=sflag, size = 0x8, scoped, tag = 'scoped memory for tpu_custom_call.1']
    #allocation14 [shape = 'u8[1024]{0}', space=vmem, size = 0x400, scoped, tag = 'input window, operand 6']
    #allocation15 [shape = 'u8[512]{0}', space=vmem, size = 0x400, scoped, tag = 'input window, operand 7, single buffered']
    #allocation16 [shape = 's32[1]{0}', space=sflag, size = 0x4, scoped, tag = 'scoped memory for tpu_custom_call.1']
    #allocation17 [shape = 'u8[512]{0}', space=vmem, size = 0x400, scoped, tag = 'input window, operand 8, single buffered']
    #allocation18 [shape = 'u8[4096]{0}', space=vmem, size = 0x1000, scoped, tag = 'output window, operand 0']
    %14 = vsyncpa [#allocation4], 0
    %s15 = scalar_lea.sflag [#allocation4], 1
    %16 = vsyncpa %s15, 0
    %17 = vsyncpa [#allocation7], 0
    %s18 = scalar_lea.sflag [#allocation7], 1
    %19 = vsyncpa %s18, 0
    %20 = vsyncpa [#allocation10], 0
    %s21 = scalar_lea.sflag [#allocation10], 1
    %22 = vsyncpa %s21, 0
    %23 = vsyncpa [#allocation13], 0
    %s24 = scalar_lea.sflag [#allocation13], 1
    %25 = vsyncpa %s24, 0
    %26 = vsyncpa [#allocation16], 0
    %27 = vsyncpa [#allocation5], 0
    %s28 = scalar_lea.sflag [#allocation5], 1
    %29 = vsyncpa %s28, 0
    loop: start=0, step=1, limit=6
    $region2: #{tpu_custom_call.1} parent=1 // loop_pre_header
      _
    $region3: #{tpu_custom_call.1} parent=1 // loop_header
      %s31 = sphi 0, %s35
      %p32 = scmp.ge.s32.totalorder %s31, 6
      %s38 = sphi 0, %s50
      %s39 = sphi 0, %s46
      %s40 = sphi 0, %s38
      %s41 = sphi 0, %s39
      %s42 = sphi 0, %s40
      %s43 = sphi 0, %s41
      %s53 = sphi 0, %s55
      %s56 = sphi 0, %s53
      %s57 = sphi 0, %s56
      %s73 = sphi 0, %s57
      %s79 = sphi 0, %s81
      %s82 = sphi 0, %s79
      %s83 = sphi 0, %s82
      %s99 = sphi 0, %s83
      %s105 = sphi 0, %s107
      %s108 = sphi 0, %s105
      %s109 = sphi 0, %s108
      %s125 = sphi 0, %s109
      %s131 = sphi 0, %s133
      %s134 = sphi 0, %s131
      %s135 = sphi 0, %s134
      %s151 = sphi 0, %s135
      %s157 = sphi 0, %s159
      %s160 = sphi 0, %s157
      %s161 = sphi 0, %s160
      %s177 = sphi 0, %s161
      %s183 = sphi 0, %s185
      %s186 = sphi 0, %s183
      %s187 = sphi 0, %s186
      %s203 = sphi 0, %s187
      %s209 = sphi 0, %s211
      %s212 = sphi 0, %s209
      %s213 = sphi 0, %s212
      %s229 = sphi 0, %s213
      %s233 = sphi 0, %s233
      %s235 = sphi 0, %s233
      %s236 = sphi 0, %s235
      %s250 = sphi 0, %s236
      %s254 = sphi 0, %s254
      %s256 = sphi 0, %s254
      %s257 = sphi 0, %s256
      %s271 = sphi 0, %s257
      %s277 = sphi 0, %s279
      %s280 = sphi 0, %s277
      %s281 = sphi 0, %s280
      %s297 = sphi 0, %s281
    $region4: #{tpu_custom_call.1} parent=1 // loop_header_branch
      %34 = sbr.rel (%p32) target = $region8
    $region5: #{tpu_custom_call.1} parent=1 // loop_body
      %s36 = ssub.s32 %s31, 1
      %s37 = ssub.s32 %s31, 2
      %s44 = sadd.s32 1, %s39
      %p45 = scmp.ge.s32.totalorder %s44, 2
      %s46 = scalar_select %p45, 0, %s44
      %s47 = sadd.s32 1, %s38
      %s48 = scalar_select %p45, %s47, %s38
      %p49 = scmp.ge.s32.totalorder %s48, 2
      %s50 = scalar_select %p49, 0, %s48
      %s51 = ssub.s32 %s38, %s50
      %p52 = scmp.eq.s32.totalorder %s51, 0
      %s54 = sadd.s32 %s53, 1
      %s55 = scalar_select %p52, %s53, %s54
      %p58 = pneg %p52
      %p59 = scmp.eq.s32.totalorder %s31, 3
      %p60 = por %p58, %p59
      %p61 = scmp.ne.s32.totalorder %s53, %s56
      %p62 = scmp.eq.s32.totalorder %s31, 0
      %p63 = por %p61, %p62
      %p64 = scmp.ne.s32.totalorder %s53, %s56
      %p65 = scmp.eq.s32.totalorder %s36, 3
      %p66 = por %p64, %p65
      %p67 = scmp.ne.s32.totalorder %s56, %s57
      %p68 = scmp.eq.s32.totalorder %s36, 0
      %p69 = por %p67, %p68
      %p70 = scmp.ne.s32.totalorder %s56, %s57
      %p71 = scmp.eq.s32.totalorder %s37, 3
      %p72 = por %p70, %p71
      %p74 = scmp.ne.s32.totalorder %s57, %s73
      %p75 = scmp.eq.s32.totalorder %s37, 0
      %p76 = por %p74, %p75
      %s77 = ssub.s32 %s39, %s46
      %p78 = scmp.eq.s32.totalorder %s77, 0
      %s80 = sadd.s32 %s79, 1
      %s81 = scalar_select %p78, %s79, %s80
      %p84 = pneg %p78
      %p85 = scmp.eq.s32.totalorder %s31, 3
      %p86 = por %p84, %p85
      %p87 = scmp.ne.s32.totalorder %s79, %s82
      %p88 = scmp.eq.s32.totalorder %s31, 0
      %p89 = por %p87, %p88
      %p90 = scmp.ne.s32.totalorder %s79, %s82
      %p91 = scmp.eq.s32.totalorder %s36, 3
      %p92 = por %p90, %p91
      %p93 = scmp.ne.s32.totalorder %s82, %s83
      %p94 = scmp.eq.s32.totalorder %s36, 0
      %p95 = por %p93, %p94
      %p96 = scmp.ne.s32.totalorder %s82, %s83
      %p97 = scmp.eq.s32.totalorder %s37, 3
      %p98 = por %p96, %p97
      %p100 = scmp.ne.s32.totalorder %s83, %s99
      %p101 = scmp.eq.s32.totalorder %s37, 0
      %p102 = por %p100, %p101
      %s103 = ssub.s32 %s39, %s46
      %p104 = scmp.eq.s32.totalorder %s103, 0
      %s106 = sadd.s32 %s105, 1
      %s107 = scalar_select %p104, %s105, %s106
      %p110 = pneg %p104
      %p111 = scmp.eq.s32.totalorder %s31, 3
      %p112 = por %p110, %p111
      %p113 = scmp.ne.s32.totalorder %s105, %s108
      %p114 = scmp.eq.s32.totalorder %s31, 0
      %p115 = por %p113, %p114
      %p116 = scmp.ne.s32.totalorder %s105, %s108
      %p117 = scmp.eq.s32.totalorder %s36, 3
      %p118 = por %p116, %p117
      %p119 = scmp.ne.s32.totalorder %s108, %s109
      %p120 = scmp.eq.s32.totalorder %s36, 0
      %p121 = por %p119, %p120
      %p122 = scmp.ne.s32.totalorder %s108, %s109
      %p123 = scmp.eq.s32.totalorder %s37, 3
      %p124 = por %p122, %p123
      %p126 = scmp.ne.s32.totalorder %s109, %s125
      %p127 = scmp.eq.s32.totalorder %s37, 0
      %p128 = por %p126, %p127
      %s129 = ssub.s32 %s39, %s46
      %p130 = scmp.eq.s32.totalorder %s129, 0
      %s132 = sadd.s32 %s131, 1
      %s133 = scalar_select %p130, %s131, %s132
      %p136 = pneg %p130
      %p137 = scmp.eq.s32.totalorder %s31, 3
      %p138 = por %p136, %p137
      %p139 = scmp.ne.s32.totalorder %s131, %s134
      %p140 = scmp.eq.s32.totalorder %s31, 0
      %p141 = por %p139, %p140
      %p142 = scmp.ne.s32.totalorder %s131, %s134
      %p143 = scmp.eq.s32.totalorder %s36, 3
      %p144 = por %p142, %p143
      %p145 = scmp.ne.s32.totalorder %s134, %s135
      %p146 = scmp.eq.s32.totalorder %s36, 0
      %p147 = por %p145, %p146
      %p148 = scmp.ne.s32.totalorder %s134, %s135
      %p149 = scmp.eq.s32.totalorder %s37, 3
      %p150 = por %p148, %p149
      %p152 = scmp.ne.s32.totalorder %s135, %s151
      %p153 = scmp.eq.s32.totalorder %s37, 0
      %p154 = por %p152, %p153
      %s155 = ssub.s32 %s39, %s46
      %p156 = scmp.eq.s32.totalorder %s155, 0
      %s158 = sadd.s32 %s157, 1
      %s159 = scalar_select %p156, %s157, %s158
      %p162 = pneg %p156
      %p163 = scmp.eq.s32.totalorder %s31, 3
      %p164 = por %p162, %p163
      %p165 = scmp.ne.s32.totalorder %s157, %s160
      %p166 = scmp.eq.s32.totalorder %s31, 0
      %p167 = por %p165, %p166
      %p168 = scmp.ne.s32.totalorder %s157, %s160
      %p169 = scmp.eq.s32.totalorder %s36, 3
      %p170 = por %p168, %p169
      %p171 = scmp.ne.s32.totalorder %s160, %s161
      %p172 = scmp.eq.s32.totalorder %s36, 0
      %p173 = por %p171, %p172
      %p174 = scmp.ne.s32.totalorder %s160, %s161
      %p175 = scmp.eq.s32.totalorder %s37, 3
      %p176 = por %p174, %p175
      %p178 = scmp.ne.s32.totalorder %s161, %s177
      %p179 = scmp.eq.s32.totalorder %s37, 0
      %p180 = por %p178, %p179
      %s181 = ssub.s32 %s39, %s46
      %p182 = scmp.eq.s32.totalorder %s181, 0
      %s184 = sadd.s32 %s183, 1
      %s185 = scalar_select %p182, %s183, %s184
      %p188 = pneg %p182
      %p189 = scmp.eq.s32.totalorder %s31, 3
      %p190 = por %p188, %p189
      %p191 = scmp.ne.s32.totalorder %s183, %s186
      %p192 = scmp.eq.s32.totalorder %s31, 0
      %p193 = por %p191, %p192
      %p194 = scmp.ne.s32.totalorder %s183, %s186
      %p195 = scmp.eq.s32.totalorder %s36, 3
      %p196 = por %p194, %p195
      %p197 = scmp.ne.s32.totalorder %s186, %s187
      %p198 = scmp.eq.s32.totalorder %s36, 0
      %p199 = por %p197, %p198
      %p200 = scmp.ne.s32.totalorder %s186, %s187
      %p201 = scmp.eq.s32.totalorder %s37, 3
      %p202 = por %p200, %p201
      %p204 = scmp.ne.s32.totalorder %s187, %s203
      %p205 = scmp.eq.s32.totalorder %s37, 0
      %p206 = por %p204, %p205
      %s207 = ssub.s32 %s39, %s46
      %p208 = scmp.eq.s32.totalorder %s207, 0
      %s210 = sadd.s32 %s209, 1
      %s211 = scalar_select %p208, %s209, %s210
      %p214 = pneg %p208
      %p215 = scmp.eq.s32.totalorder %s31, 3
      %p216 = por %p214, %p215
      %p217 = scmp.ne.s32.totalorder %s209, %s212
      %p218 = scmp.eq.s32.totalorder %s31, 0
      %p219 = por %p217, %p218
      %p220 = scmp.ne.s32.totalorder %s209, %s212
      %p221 = scmp.eq.s32.totalorder %s36, 3
      %p222 = por %p220, %p221
      %p223 = scmp.ne.s32.totalorder %s212, %s213
      %p224 = scmp.eq.s32.totalorder %s36, 0
      %p225 = por %p223, %p224
      %p226 = scmp.ne.s32.totalorder %s212, %s213
      %p227 = scmp.eq.s32.totalorder %s37, 3
      %p228 = por %p226, %p227
      %p230 = scmp.ne.s32.totalorder %s213, %s229
      %p231 = scmp.eq.s32.totalorder %s37, 0
      %p232 = por %p230, %p231
      %s234 = sadd.s32 %s233, 1
      %p237 = scmp.eq.s32.totalorder %s31, 3
      %p238 = scmp.ne.s32.totalorder %s233, %s235
      %p239 = scmp.eq.s32.totalorder %s31, 0
      %p240 = por %p238, %p239
      %p241 = scmp.ne.s32.totalorder %s233, %s235
      %p242 = scmp.eq.s32.totalorder %s36, 3
      %p243 = por %p241, %p242
      %p244 = scmp.ne.s32.totalorder %s235, %s236
      %p245 = scmp.eq.s32.totalorder %s36, 0
      %p246 = por %p244, %p245
      %p247 = scmp.ne.s32.totalorder %s235, %s236
      %p248 = scmp.eq.s32.totalorder %s37, 3
      %p249 = por %p247, %p248
      %p251 = scmp.ne.s32.totalorder %s236, %s250
      %p252 = scmp.eq.s32.totalorder %s37, 0
      %p253 = por %p251, %p252
      %s255 = sadd.s32 %s254, 1
      %p258 = scmp.eq.s32.totalorder %s31, 3
      %p259 = scmp.ne.s32.totalorder %s254, %s256
      %p260 = scmp.eq.s32.totalorder %s31, 0
      %p261 = por %p259, %p260
      %p262 = scmp.ne.s32.totalorder %s254, %s256
      %p263 = scmp.eq.s32.totalorder %s36, 3
      %p264 = por %p262, %p263
      %p265 = scmp.ne.s32.totalorder %s256, %s257
      %p266 = scmp.eq.s32.totalorder %s36, 0
      %p267 = por %p265, %p266
      %p268 = scmp.ne.s32.totalorder %s256, %s257
      %p269 = scmp.eq.s32.totalorder %s37, 3
      %p270 = por %p268, %p269
      %p272 = scmp.ne.s32.totalorder %s257, %s271
      %p273 = scmp.eq.s32.totalorder %s37, 0
      %p274 = por %p272, %p273
      %s275 = ssub.s32 %s38, %s50
      %p276 = scmp.eq.s32.totalorder %s275, 0
      %s278 = sadd.s32 %s277, 1
      %s279 = scalar_select %p276, %s277, %s278
      %p282 = pneg %p276
      %p283 = scmp.eq.s32.totalorder %s31, 3
      %p284 = por %p282, %p283
      %p285 = scmp.ne.s32.totalorder %s277, %s280
      %p286 = scmp.eq.s32.totalorder %s31, 0
      %p287 = por %p285, %p286
      %p288 = scmp.ne.s32.totalorder %s277, %s280
      %p289 = scmp.eq.s32.totalorder %s36, 3
      %p290 = por %p288, %p289
      %p291 = scmp.ne.s32.totalorder %s280, %s281
      %p292 = scmp.eq.s32.totalorder %s36, 0
      %p293 = por %p291, %p292
      %p294 = scmp.ne.s32.totalorder %s280, %s281
      %p295 = scmp.eq.s32.totalorder %s37, 3
      %p296 = por %p294, %p295
      %p298 = scmp.ne.s32.totalorder %s281, %s297
      %p299 = scmp.eq.s32.totalorder %s37, 0
      %p300 = por %p298, %p299
      %p301 = scmp.le.s32.totalorder 1, %s31
      %p302 = scmp.lt.s32.totalorder %s31, 5
      %p303 = pnand %p301, %p302
      %p304 = pneg %p303
      // Predicated region
      $region9: #{tpu_custom_call.1} parent=5 // pred_check
        _
      $region10: #{tpu_custom_call.1} parent=5 // pred_check_branch
        %306 = sbr.rel (%p303) target = $region12
      $region11: #{tpu_custom_call.1} parent=5 // pred_region
        %s307 = ssub.s32 %s31, 1
        // Predicated region
        $region13: #{tpu_custom_call.1} parent=11 // pred_check
          %p308 = pneg %p246
        $region14: #{tpu_custom_call.1} parent=11 // pred_check_branch
          %310 = sbr.rel (%p308) target = $region16
        $region15: #{tpu_custom_call.1} parent=11 // pred_region
          %s312 = ssub.s32 16, 16
          %313 = vsyncadd [#allocation16], %s312
          %s315 = sshll.u32 [#allocation15], 4
          %s316 = int_to_ptr.vmem [resolvable:$true] %s315
          %318 = dma.hbm_to_vmem [thread:$0]  %s7, 16, %s316, [#allocation16]
        $region16: #{tpu_custom_call.1} parent=11 // pred_fallthru
          _
        // Predicated region
        $region17: #{tpu_custom_call.1} parent=11 // pred_check
          %p319 = pneg %p267
        $region18: #{tpu_custom_call.1} parent=11 // pred_check_branch
          %321 = sbr.rel (%p319) target = $region20
        $region19: #{tpu_custom_call.1} parent=11 // pred_region
          %s323 = ssub.s32 16, 16
          %324 = vsyncadd [#allocation16], %s323
          %s326 = sshll.u32 [#allocation17], 4
          %s327 = int_to_ptr.vmem [resolvable:$true] %s326
          %329 = dma.hbm_to_vmem [thread:$0]  %s8, 16, %s327, [#allocation16]
        $region20: #{tpu_custom_call.1} parent=11 // pred_fallthru
          _
      $region12: #{tpu_custom_call.1} parent=5 // pred_fallthru
        _
      %p330 = scmp.lt.s32.totalorder %s31, 4
      // Predicated region
      $region21: #{tpu_custom_call.1} parent=5 // pred_check
        %p331 = pneg %p330
      $region22: #{tpu_custom_call.1} parent=5 // pred_check_branch
        %333 = sbr.rel (%p331) target = $region24
      $region23: #{tpu_custom_call.1} parent=5 // pred_region
        // Predicated region
        $region25: #{tpu_custom_call.1} parent=23 // pred_check
          %p334 = pneg %p63
        $region26: #{tpu_custom_call.1} parent=23 // pred_check_branch
          %336 = sbr.rel (%p334) target = $region28
        $region27: #{tpu_custom_call.1} parent=23 // pred_region
          %s337 = sand.u32 %s53, 1
          %s338 = scalar_lea.sflag [#allocation4], %s337
          %s339 = sand.u32 %s53, 1
          %s340 = smul.addr %s339, 8
          %s341 = scalar_lea.vmem [#allocation3], %s340
          %s343 = ssub.s32 128, 128
          %344 = vsyncadd %s338, %s343
          %s345 = smul.addr %s38, 128
          %s346 = scalar_lea.hbm %s0, %s345
          %s348 = sshll.u32 %s341, 4
          %s349 = int_to_ptr.vmem [resolvable:$true] %s348
          %351 = dma.hbm_to_vmem [thread:$0]  %s346, 128, %s349, %s338
        $region28: #{tpu_custom_call.1} parent=23 // pred_fallthru
          _
        // Predicated region
        $region29: #{tpu_custom_call.1} parent=23 // pred_check
          %p352 = pneg %p89
        $region30: #{tpu_custom_call.1} parent=23 // pred_check_branch
          %354 = sbr.rel (%p352) target = $region32
        $region31: #{tpu_custom_call.1} parent=23 // pred_region
          %s355 = sand.u32 %s31, 1
          %s356 = scalar_lea.sflag [#allocation7], %s355
          %s357 = sand.u32 %s79, 1
          %s358 = smul.addr %s357, 16
          %s359 = scalar_lea.vmem [#allocation6], %s358
          %s361 = ssub.s32 256, 256
          %362 = vsyncadd %s356, %s361
          %s363 = smul.addr %s39, 4
          %s364 = smul.addr %s363, 64
          %s365 = scalar_lea.hbm %s1, %s364
          %s366 = sshll.u32 %s359, 4
          %s367 = int_to_ptr.vmem [resolvable:$true] %s366
          %372 = dma.hbm_to_vmem [thread:$0]  %s365, 256, %s367, %s356, 64, 64, 4
        $region32: #{tpu_custom_call.1} parent=23 // pred_fallthru
          _
        // Predicated region
        $region33: #{tpu_custom_call.1} parent=23 // pred_check
          %p373 = pneg %p115
        $region34: #{tpu_custom_call.1} parent=23 // pred_check_branch
          %375 = sbr.rel (%p373) target = $region36
        $region35: #{tpu_custom_call.1} parent=23 // pred_region
          %s376 = sand.u32 %s31, 1
          %s377 = scalar_lea.sflag [#allocation7], %s376
          %s378 = sand.u32 %s105, 1
          %s379 = smul.addr %s378, 16
          %s380 = scalar_lea.vmem [#allocation8], %s379
          %s382 = ssub.s32 256, 256
          %383 = vsyncadd %s377, %s382
          %s384 = smul.addr %s39, 4
          %s385 = smul.addr %s384, 64
          %s386 = scalar_lea.hbm %s2, %s385
          %s387 = sshll.u32 %s380, 4
          %s388 = int_to_ptr.vmem [resolvable:$true] %s387
          %393 = dma.hbm_to_vmem [thread:$0]  %s386, 256, %s388, %s377, 64, 64, 4
        $region36: #{tpu_custom_call.1} parent=23 // pred_fallthru
          _
        // Predicated region
        $region37: #{tpu_custom_call.1} parent=23 // pred_check
          %p394 = pneg %p141
        $region38: #{tpu_custom_call.1} parent=23 // pred_check_branch
          %396 = sbr.rel (%p394) target = $region40
        $region39: #{tpu_custom_call.1} parent=23 // pred_region
          %s397 = sand.u32 %s31, 1
          %s398 = scalar_lea.sflag [#allocation10], %s397
          %s399 = sand.u32 %s131, 1
          %s400 = smul.addr %s399, 16
          %s401 = scalar_lea.vmem [#allocation9], %s400
          %s403 = ssub.s32 256, 256
          %404 = vsyncadd %s398, %s403
          %s405 = smul.addr %s39, 4
          %s406 = smul.addr %s405, 64
          %s407 = scalar_lea.hbm %s3, %s406
          %s408 = sshll.u32 %s401, 4
          %s409 = int_to_ptr.vmem [resolvable:$true] %s408
          %414 = dma.hbm_to_vmem [thread:$0]  %s407, 256, %s409, %s398, 64, 64, 4
        $region40: #{tpu_custom_call.1} parent=23 // pred_fallthru
          _
        // Predicated region
        $region41: #{tpu_custom_call.1} parent=23 // pred_check
          %p415 = pneg %p167
        $region42: #{tpu_custom_call.1} parent=23 // pred_check_branch
          %417 = sbr.rel (%p415) target = $region44
        $region43: #{tpu_custom_call.1} parent=23 // pred_region
          %s418 = sand.u32 %s31, 1
          %s419 = scalar_lea.sflag [#allocation10], %s418
          %s420 = sand.u32 %s157, 1
          %s421 = smul.addr %s420, 64
          %s422 = scalar_lea.vmem [#allocation11], %s421
          %s424 = ssub.s32 1024, 1024
          %425 = vsyncadd %s419, %s424
          %s426 = smul.addr %s39, 16
          %s427 = smul.addr %s426, 64
          %s428 = scalar_lea.hbm %s4, %s427
          %s429 = sshll.u32 %s422, 4
          %s430 = int_to_ptr.vmem [resolvable:$true] %s429
          %435 = dma.hbm_to_vmem [thread:$0]  %s428, 1024, %s430, %s419, 64, 64, 4
        $region44: #{tpu_custom_call.1} parent=23 // pred_fallthru
          _
        // Predicated region
        $region45: #{tpu_custom_call.1} parent=23 // pred_check
          %p436 = pneg %p193
        $region46: #{tpu_custom_call.1} parent=23 // pred_check_branch
          %438 = sbr.rel (%p436) target = $region48
        $region47: #{tpu_custom_call.1} parent=23 // pred_region
          %s439 = sand.u32 %s31, 1
          %s440 = scalar_lea.sflag [#allocation13], %s439
          %s441 = sand.u32 %s183, 1
          %s442 = smul.addr %s441, 8
          %s443 = scalar_lea.vmem [#allocation12], %s442
          %s445 = ssub.s32 128, 128
          %446 = vsyncadd %s440, %s445
          %s447 = smul.addr %s39, 128
          %s448 = scalar_lea.hbm %s5, %s447
          %s450 = sshll.u32 %s443, 4
          %s451 = int_to_ptr.vmem [resolvable:$true] %s450
          %453 = dma.hbm_to_vmem [thread:$0]  %s448, 128, %s451, %s440
        $region48: #{tpu_custom_call.1} parent=23 // pred_fallthru
          _
        // Predicated region
        $region49: #{tpu_custom_call.1} parent=23 // pred_check
          %p454 = pneg %p219
        $region50: #{tpu_custom_call.1} parent=23 // pred_check_branch
          %456 = sbr.rel (%p454) target = $region52
        $region51: #{tpu_custom_call.1} parent=23 // pred_region
          %s457 = sand.u32 %s31, 1
          %s458 = scalar_lea.sflag [#allocation13], %s457
          %s459 = sand.u32 %s209, 1
          %s460 = scalar_lea.vmem [#allocation14], %s459
          %s462 = ssub.s32 16, 16
          %463 = vsyncadd %s458, %s462
          %s464 = smul.addr %s39, 16
          %s465 = scalar_lea.hbm %s6, %s464
          %s467 = sshll.u32 %s460, 4
          %s468 = int_to_ptr.vmem [resolvable:$true] %s467
          %470 = dma.hbm_to_vmem [thread:$0]  %s465, 16, %s468, %s458
        $region52: #{tpu_custom_call.1} parent=23 // pred_fallthru
          _
      $region24: #{tpu_custom_call.1} parent=5 // pred_fallthru
        _
      %p471 = scmp.le.s32.totalorder 1, %s31
      %p472 = scmp.lt.s32.totalorder %s31, 5
      %p473 = pnand %p471, %p472
      %p474 = pneg %p473
      // Predicated region
      $region53: #{tpu_custom_call.1} parent=5 // pred_check
        _
      $region54: #{tpu_custom_call.1} parent=5 // pred_check_branch
        %476 = sbr.rel (%p473) target = $region56
      $region55: #{tpu_custom_call.1} parent=5 // pred_region
        %s477 = ssub.s32 %s31, 1
        %s478 = sand.u32 %s56, 1
        %s479 = scalar_lea.sflag [#allocation4], %s478
        %s480 = sand.u32 %s56, 1
        %s481 = smul.addr %s480, 8
        %s482 = scalar_lea.vmem [#allocation3], %s481
        // Predicated region
        $region57: #{tpu_custom_call.1} parent=55 // pred_check
          %p483 = pneg %p69
        $region58: #{tpu_custom_call.1} parent=55 // pred_check_branch
          %485 = sbr.rel (%p483) target = $region60
        $region59: #{tpu_custom_call.1} parent=55 // pred_region
          %486 = dma.done %s479, 128
        $region60: #{tpu_custom_call.1} parent=55 // pred_fallthru
          _
        %s487 = sand.u32 %s36, 1
        %s488 = scalar_lea.sflag [#allocation7], %s487
        %s489 = sand.u32 %s82, 1
        %s490 = smul.addr %s489, 16
        %s491 = scalar_lea.vmem [#allocation6], %s490
        // Predicated region
        $region61: #{tpu_custom_call.1} parent=55 // pred_check
          %p492 = pneg %p95
        $region62: #{tpu_custom_call.1} parent=55 // pred_check_branch
          %494 = sbr.rel (%p492) target = $region64
        $region63: #{tpu_custom_call.1} parent=55 // pred_region
          %495 = dma.done %s488, 256
        $region64: #{tpu_custom_call.1} parent=55 // pred_fallthru
          _
        %s496 = sand.u32 %s36, 1
        %s497 = scalar_lea.sflag [#allocation7], %s496
        %s498 = sand.u32 %s108, 1
        %s499 = smul.addr %s498, 16
        %s500 = scalar_lea.vmem [#allocation8], %s499
        // Predicated region
        $region65: #{tpu_custom_call.1} parent=55 // pred_check
          %p501 = pneg %p121
        $region66: #{tpu_custom_call.1} parent=55 // pred_check_branch
          %503 = sbr.rel (%p501) target = $region68
        $region67: #{tpu_custom_call.1} parent=55 // pred_region
          %504 = dma.done %s497, 256
        $region68: #{tpu_custom_call.1} parent=55 // pred_fallthru
          _
        %s505 = sand.u32 %s36, 1
        %s506 = scalar_lea.sflag [#allocation10], %s505
        %s507 = sand.u32 %s134, 1
        %s508 = smul.addr %s507, 16
        %s509 = scalar_lea.vmem [#allocation9], %s508
        // Predicated region
        $region69: #{tpu_custom_call.1} parent=55 // pred_check
          %p510 = pneg %p147
        $region70: #{tpu_custom_call.1} parent=55 // pred_check_branch
          %512 = sbr.rel (%p510) target = $region72
        $region71: #{tpu_custom_call.1} parent=55 // pred_region
          %513 = dma.done %s506, 256
        $region72: #{tpu_custom_call.1} parent=55 // pred_fallthru
          _
        %s514 = sand.u32 %s36, 1
        %s515 = scalar_lea.sflag [#allocation10], %s514
        %s516 = sand.u32 %s160, 1
        %s517 = smul.addr %s516, 64
        %s518 = scalar_lea.vmem [#allocation11], %s517
        // Predicated region
        $region73: #{tpu_custom_call.1} parent=55 // pred_check
          %p519 = pneg %p173
        $region74: #{tpu_custom_call.1} parent=55 // pred_check_branch
          %521 = sbr.rel (%p519) target = $region76
        $region75: #{tpu_custom_call.1} parent=55 // pred_region
          %522 = dma.done %s515, 1024
        $region76: #{tpu_custom_call.1} parent=55 // pred_fallthru
          _
        %s523 = sand.u32 %s36, 1
        %s524 = scalar_lea.sflag [#allocation13], %s523
        %s525 = sand.u32 %s186, 1
        %s526 = smul.addr %s525, 8
        %s527 = scalar_lea.vmem [#allocation12], %s526
        // Predicated region
        $region77: #{tpu_custom_call.1} parent=55 // pred_check
          %p528 = pneg %p199
        $region78: #{tpu_custom_call.1} parent=55 // pred_check_branch
          %530 = sbr.rel (%p528) target = $region80
        $region79: #{tpu_custom_call.1} parent=55 // pred_region
          %531 = dma.done %s524, 128
        $region80: #{tpu_custom_call.1} parent=55 // pred_fallthru
          _
        %s532 = sand.u32 %s36, 1
        %s533 = scalar_lea.sflag [#allocation13], %s532
        %s534 = sand.u32 %s212, 1
        %s535 = scalar_lea.vmem [#allocation14], %s534
        // Predicated region
        $region81: #{tpu_custom_call.1} parent=55 // pred_check
          %p536 = pneg %p225
        $region82: #{tpu_custom_call.1} parent=55 // pred_check_branch
          %538 = sbr.rel (%p536) target = $region84
        $region83: #{tpu_custom_call.1} parent=55 // pred_region
          %539 = dma.done %s533, 16
        $region84: #{tpu_custom_call.1} parent=55 // pred_fallthru
          _
        // Predicated region
        $region85: #{tpu_custom_call.1} parent=55 // pred_check
          %p540 = pneg %p246
        $region86: #{tpu_custom_call.1} parent=55 // pred_check_branch
          %542 = sbr.rel (%p540) target = $region88
        $region87: #{tpu_custom_call.1} parent=55 // pred_region
          %543 = dma.done [#allocation16], 16
        $region88: #{tpu_custom_call.1} parent=55 // pred_fallthru
          _
        // Predicated region
        $region89: #{tpu_custom_call.1} parent=55 // pred_check
          %p544 = pneg %p267
        $region90: #{tpu_custom_call.1} parent=55 // pred_check_branch
          %546 = sbr.rel (%p544) target = $region92
        $region91: #{tpu_custom_call.1} parent=55 // pred_region
          %547 = dma.done [#allocation16], 16
        $region92: #{tpu_custom_call.1} parent=55 // pred_fallthru
          _
        %s548 = sand.u32 %s56, 1
        %s549 = scalar_lea.sflag [#allocation4], %s548
        %s550 = sand.u32 %s56, 1
        %s551 = smul.addr %s550, 8
        %s552 = scalar_lea.vmem [#allocation3], %s551
        %p553 = pneg %p69
        %p554 = pneg %p66
        %s555 = sand.u32 %s36, 1
        %s556 = scalar_lea.sflag [#allocation7], %s555
        %s557 = sand.u32 %s82, 1
        %s558 = smul.addr %s557, 16
        %s559 = scalar_lea.vmem [#allocation6], %s558
        %p560 = pneg %p95
        %p561 = pneg %p92
        %s562 = sand.u32 %s36, 1
        %s563 = scalar_lea.sflag [#allocation7], %s562
        %s564 = sand.u32 %s108, 1
        %s565 = smul.addr %s564, 16
        %s566 = scalar_lea.vmem [#allocation8], %s565
        %p567 = pneg %p121
        %p568 = pneg %p118
        %s569 = sand.u32 %s36, 1
        %s570 = scalar_lea.sflag [#allocation10], %s569
        %s571 = sand.u32 %s134, 1
        %s572 = smul.addr %s571, 16
        %s573 = scalar_lea.vmem [#allocation9], %s572
        %p574 = pneg %p147
        %p575 = pneg %p144
        %s576 = sand.u32 %s36, 1
        %s577 = scalar_lea.sflag [#allocation10], %s576
        %s578 = sand.u32 %s160, 1
        %s579 = smul.addr %s578, 64
        %s580 = scalar_lea.vmem [#allocation11], %s579
        %p581 = pneg %p173
        %p582 = pneg %p170
        %s583 = sand.u32 %s36, 1
        %s584 = scalar_lea.sflag [#allocation13], %s583
        %s585 = sand.u32 %s186, 1
        %s586 = smul.addr %s585, 8
        %s587 = scalar_lea.vmem [#allocation12], %s586
        %p588 = pneg %p199
        %p589 = pneg %p196
        %s590 = sand.u32 %s36, 1
        %s591 = scalar_lea.sflag [#allocation13], %s590
        %s592 = sand.u32 %s212, 1
        %s593 = scalar_lea.vmem [#allocation14], %s592
        %p594 = pneg %p225
        %p595 = pneg %p222
        %p596 = pneg %p246
        %p597 = pneg %p243
        %p598 = pneg %p267
        %p599 = pneg %p264
        %p600 = pneg %p293
        %p601 = pneg %p290
        %s602 = sand.u32 %s280, 1
        %s603 = scalar_lea.sflag [#allocation5], %s602
        %s604 = sand.u32 %s280, 1
        %s605 = smul.addr %s604, 4
        %s606 = scalar_lea.vmem [#allocation18], %s605
        %p608 = scmp.eq.s32.totalorder %s41, 0
        // Predicated region
        $region93: #{tpu_custom_call.1} parent=55 // pred_check
          %p609 = pneg %p608
        $region94: #{tpu_custom_call.1} parent=55 // pred_check_branch
          %611 = sbr.rel (%p609) target = $region96
        $region95: #{tpu_custom_call.1} parent=55 // pred_region
          %v612 = vld [vmem:[%s482] sm:$0xff]
          %vm613 = vcmask 261120
          %614 = vst.msk [vmem:[#allocation2] sm:$0xff] %vm613, %v612
        $region96: #{tpu_custom_call.1} parent=55 // pred_fallthru
          _
        %v615 = vld [vmem:[#allocation2] sm:$0xff]
        %v616 = vld [vmem:[%s527] sm:$0x3f]
        %vm617 = vcmask 261120
        %v618 = vsel %vm617, %v615, 0.0
        %619 = vadd.xlane.f32.xlu0 %v618
        %v620 = vpop.xlane.xlu0 %619
        %v621 = vrcp.pop 32.0
        %v622 = vmul.f32 %v620, %v621
        %v623 = vsub.f32 %v615, %v622
        %v624 = vmul.f32 %v623, %v623
        %v625 = vsel %vm617, %v624, 0.0
        %626 = vadd.xlane.f32.xlu0 %v625
        %v627 = vpop.xlane.xlu0 %626
        %v628 = vmul.f32 %v627, %v621
        %v629 = vadd.f32 %v628, 1e-05
        %v630 = vrsqrt.pop %v629
        %v631 = vmul.f32 %v623, %v630
        %v632 = vlaneseq
        %v633 = vshrl.u32 %v632, 7
        %v634 = vsub.s32 0, %v633
        %v635 = vrot.slane %v616, %v634
        %v636 = vmul.f32 %v631, %v635
        %v637 = vlaneseq
        %v638 = vshrl.u32 %v637, 7
        %v639 = vsub.s32 1, %v638
        %v640 = vrot.slane %v616, %v639
        %v641 = vadd.f32 %v636, %v640
        %v642 = vpack.c.bf16 %v641, %v641
        %v643 = vld [vmem:[%s491] sm:$0xf]
        %v644 = vld [vmem:[%s491 + $0x4] sm:$0xf]
        %v645 = vld [vmem:[%s491 + $0x8] sm:$0xf]
        %v646 = vld [vmem:[%s491 + $0xc] sm:$0xf]
        %v651 = vunpack.c.l.b16 %v643
        %v652 = vunpack.c.l.b16 %v644
        %v653 = vunpack.c.l.b16 %v645
        %v654 = vunpack.c.l.b16 %v646
        %v655 = vpack.c.b16 %v652, %v651
        %v656 = vpack.c.b16 %v654, %v653
        %v660 = vsel %vm617, %v642, 0
        %662 = vmatprep.subr.bf16.mxu0 0
        %663 = vmatpush1.bf16.msra.mxu0 %v655
        %664 = vmatprep.subr.bf16.mxu0 0
        %665 = vmatpush1.bf16.msra.mxu0 %v656
        %666 = vmatprep.subr.bf16.mxu0 0
        %667 = vmatpush1.bf16.msra.mxu0 0
        %668 = vmatprep.subr.bf16.mxu0 0
        %669 = vmatpush1.bf16.msra.mxu0 0
        %670 = vmatprep.subr.bf16.mxu0 0
        %671 = vmatpush1.bf16.msra.mxu0 0
        %672 = vmatprep.subr.bf16.mxu0 0
        %673 = vmatpush1.bf16.msra.mxu0 0
        %674 = vmatprep.subr.bf16.mxu0 0
        %675 = vmatpush1.bf16.msra.mxu0 0
        %676 = vmatprep.subr.bf16.mxu0 0
        %677 = vmatpush1.bf16.msra.mxu0 0
        %678 = vmatprep.subr.bf16.mxu0 0
        %679 = vmatpush1.bf16.msra.mxu0 0
        %680 = vmatprep.subr.bf16.mxu0 0
        %681 = vmatpush1.bf16.msra.mxu0 0
        %682 = vmatprep.subr.bf16.mxu0 0
        %683 = vmatpush1.bf16.msra.mxu0 0
        %684 = vmatprep.subr.bf16.mxu0 0
        %685 = vmatpush1.bf16.msra.mxu0 0
        %686 = vmatprep.subr.bf16.mxu0 0
        %687 = vmatpush1.bf16.msra.mxu0 0
        %688 = vmatprep.subr.bf16.mxu0 0
        %689 = vmatpush1.bf16.msra.mxu0 0
        %690 = vmatprep.subr.bf16.mxu0 0
        %691 = vmatpush1.bf16.msra.mxu0 0
        %692 = vmatprep.subr.bf16.mxu0 0
        %693 = vmatpush1.bf16.msra.mxu0 0
        %694 = vmatprep.mubr.bf16.mxu0 0
        %695 = vmatmul.mubr.bf16.gmra.mrb[0].mxu0 %v660
        %v696 = vpop.f32.mrb[0].mxu0
        %v697 = vadd.f32 0.0, %v696
        %v698 = vpop.f32.mrb[0].mxu0
        %v699 = vpop.f32.mrb[0].mxu0
        %v700 = vpop.f32.mrb[0].mxu0
        %701 = vdwg.mxu0
        %v702 = vlaneseq
        %v703 = vshrl.u32 %v702, 7
        %v704 = vlaneseq
        %v705 = vand.u32 %v704, 127
        %vm706 = vcmp.ge.s32.totalorder %v703, %v705
        %708 = vrot.lane.b32.xlu0 %v697, 96
        %v709 = vpop.permute.xlu0 %708
        %vm710 = vcmask 64512
        %v711 = vsel %vm710, %v697, 0
        %v713 = vsel %vm710, %v709, 0
        %715 = vmatprep.subr.mxu0 0.0
        %716 = vmatpush1.xpose.msra.mxu0 %v713
        %717 = vmatprep.subr.mxu0 0.0
        %718 = vmatpush1.xpose.msra.mxu0 0.0
        %719 = vmatprep.subr.mxu0 0.0
        %720 = vmatpush1.xpose.msra.mxu0 0.0
        %721 = vmatprep.subr.mxu0 0.0
        %722 = vmatpush1.xpose.msra.mxu0 0.0
        %723 = vmatprep.subr.mxu0 0.0
        %724 = vmatpush1.xpose.msra.mxu0 0.0
        %725 = vmatprep.subr.mxu0 0.0
        %726 = vmatpush1.xpose.msra.mxu0 0.0
        %727 = vmatprep.subr.mxu0 0.0
        %728 = vmatpush1.xpose.msra.mxu0 0.0
        %729 = vmatprep.subr.mxu0 0.0
        %730 = vmatpush1.xpose.msra.mxu0 0.0
        %731 = vmatprep.subr.mxu0 0.0
        %732 = vmatpush1.xpose.msra.mxu0 0.0
        %733 = vmatprep.subr.mxu0 0.0
        %734 = vmatpush1.xpose.msra.mxu0 0.0
        %735 = vmatprep.subr.mxu0 0.0
        %736 = vmatpush1.xpose.msra.mxu0 0.0
        %737 = vmatprep.subr.mxu0 0.0
        %738 = vmatpush1.xpose.msra.mxu0 0.0
        %739 = vmatprep.subr.mxu0 0.0
        %740 = vmatpush1.xpose.msra.mxu0 0.0
        %741 = vmatprep.subr.mxu0 0.0
        %742 = vmatpush1.xpose.msra.mxu0 0.0
        %743 = vmatprep.subr.mxu0 0.0
        %744 = vmatpush1.xpose.msra.mxu0 0.0
        %745 = vmatprep.subr.mxu0 0.0
        %746 = vmatpush1.xpose.msra.mxu0 0.0
        %747 = vmatprep.subr.mxu0 0.0
        %748 = vmatpush1.xpose.msra.mxu0 0.0
        %749 = vmatprep.subr.mxu0 0.0
        %750 = vmatpush1.xpose.msra.mxu0 0.0
        %751 = vmatprep.subr.mxu0 0.0
        %752 = vmatpush1.xpose.msra.mxu0 0.0
        %753 = vmatprep.subr.mxu0 0.0
        %754 = vmatpush1.xpose.msra.mxu0 0.0
        %755 = vmatprep.subr.mxu0 0.0
        %756 = vmatpush1.xpose.msra.mxu0 0.0
        %757 = vmatprep.subr.mxu0 0.0
        %758 = vmatpush1.xpose.msra.mxu0 0.0
        %759 = vmatprep.subr.mxu0 0.0
        %760 = vmatpush1.xpose.msra.mxu0 0.0
        %761 = vmatprep.subr.mxu0 0.0
        %762 = vmatpush1.xpose.msra.mxu0 0.0
        %763 = vmatprep.subr.mxu0 0.0
        %764 = vmatpush1.xpose.msra.mxu0 0.0
        %765 = vmatprep.subr.mxu0 0.0
        %766 = vmatpush1.xpose.msra.mxu0 0.0
        %767 = vmatprep.subr.mxu0 0.0
        %768 = vmatpush1.xpose.msra.mxu0 0.0
        %769 = vmatprep.subr.mxu0 0.0
        %770 = vmatpush1.xpose.msra.mxu0 0.0
        %771 = vmatprep.subr.mxu0 0.0
        %772 = vmatpush1.xpose.msra.mxu0 0.0
        %773 = vmatprep.subr.mxu0 0.0
        %774 = vmatpush1.xpose.msra.mxu0 0.0
        %775 = vmatprep.subr.mxu0 0.0
        %776 = vmatpush1.xpose.msra.mxu0 0.0
        %777 = vmatprep.subr.mxu0 0.0
        %778 = vmatpush1.xpose.msra.mxu0 0.0
        %779 = vmatprep.mubr.f32.mxu0 0.0
        %780 = vmatmul.mubr.f32.gmra.mrb[0].mxu0 %v711
        %v781 = vpop.f32.mrb[0].mxu0
        %v782 = vadd.f32 0.0, %v781
        %v783 = vpop.f32.mrb[0].mxu0
        %784 = vdwg.mxu0
        %v785 = vmul.f32 %v782, 0.35355338
        %v786 = vsel %vm706, %v785, -1e+30
        %v787 = vsel %vm710, %v786, -inf
        %788 = vmax.xlane.f32.xlu0 %v787
        %v789 = vpop.xlane.xlu0 %788
        %v790 = vsub.f32 %v786, %v789
        %v791 = vmul.f32 %v790, 1.442695
        %v792 = vpow.pop %v791
        %v793 = vsel %vm710, %v792, 0.0
        %794 = vadd.xlane.f32.xlu0 %v793
        %v795 = vpop.xlane.xlu0 %794
        %v796 = vrcp.pop %v795
        %v797 = vmul.f32 %v792, %v796
        %798 = vrot.lane.b32.xlu0 %v697, 64
        %v799 = vpop.permute.xlu0 %798
        %v802 = vsel %vm710, %v797, 0
        %804 = vmatprep.subr.mxu0 0.0
        %805 = vmatpush1.msra.mxu0 %v799
        %806 = vmatprep.subr.mxu0 0.0
        %807 = vmatpush1.msra.mxu0 0.0
        %808 = vmatprep.subr.mxu0 0.0
        %809 = vmatpush1.msra.mxu0 0.0
        %810 = vmatprep.subr.mxu0 0.0
        %811 = vmatpush1.msra.mxu0 0.0
        %812 = vmatprep.subr.mxu0 0.0
        %813 = vmatpush1.msra.mxu0 0.0
        %814 = vmatprep.subr.mxu0 0.0
        %815 = vmatpush1.msra.mxu0 0.0
        %816 = vmatprep.subr.mxu0 0.0
        %817 = vmatpush1.msra.mxu0 0.0
        %818 = vmatprep.subr.mxu0 0.0
        %819 = vmatpush1.msra.mxu0 0.0
        %820 = vmatprep.subr.mxu0 0.0
        %821 = vmatpush1.msra.mxu0 0.0
        %822 = vmatprep.subr.mxu0 0.0
        %823 = vmatpush1.msra.mxu0 0.0
        %824 = vmatprep.subr.mxu0 0.0
        %825 = vmatpush1.msra.mxu0 0.0
        %826 = vmatprep.subr.mxu0 0.0
        %827 = vmatpush1.msra.mxu0 0.0
        %828 = vmatprep.subr.mxu0 0.0
        %829 = vmatpush1.msra.mxu0 0.0
        %830 = vmatprep.subr.mxu0 0.0
        %831 = vmatpush1.msra.mxu0 0.0
        %832 = vmatprep.subr.mxu0 0.0
        %833 = vmatpush1.msra.mxu0 0.0
        %834 = vmatprep.subr.mxu0 0.0
        %835 = vmatpush1.msra.mxu0 0.0
        %836 = vmatprep.subr.mxu0 0.0
        %837 = vmatpush1.msra.mxu0 0.0
        %838 = vmatprep.subr.mxu0 0.0
        %839 = vmatpush1.msra.mxu0 0.0
        %840 = vmatprep.subr.mxu0 0.0
        %841 = vmatpush1.msra.mxu0 0.0
        %842 = vmatprep.subr.mxu0 0.0
        %843 = vmatpush1.msra.mxu0 0.0
        %844 = vmatprep.subr.mxu0 0.0
        %845 = vmatpush1.msra.mxu0 0.0
        %846 = vmatprep.subr.mxu0 0.0
        %847 = vmatpush1.msra.mxu0 0.0
        %848 = vmatprep.subr.mxu0 0.0
        %849 = vmatpush1.msra.mxu0 0.0
        %850 = vmatprep.subr.mxu0 0.0
        %851 = vmatpush1.msra.mxu0 0.0
        %852 = vmatprep.subr.mxu0 0.0
        %853 = vmatpush1.msra.mxu0 0.0
        %854 = vmatprep.subr.mxu0 0.0
        %855 = vmatpush1.msra.mxu0 0.0
        %856 = vmatprep.subr.mxu0 0.0
        %857 = vmatpush1.msra.mxu0 0.0
        %858 = vmatprep.subr.mxu0 0.0
        %859 = vmatpush1.msra.mxu0 0.0
        %860 = vmatprep.subr.mxu0 0.0
        %861 = vmatpush1.msra.mxu0 0.0
        %862 = vmatprep.subr.mxu0 0.0
        %863 = vmatpush1.msra.mxu0 0.0
        %864 = vmatprep.subr.mxu0 0.0
        %865 = vmatpush1.msra.mxu0 0.0
        %866 = vmatprep.subr.mxu0 0.0
        %867 = vmatpush1.msra.mxu0 0.0
        %868 = vmatprep.mubr.f32.mxu0 0.0
        %869 = vmatmul.mubr.f32.gmra.mrb[0].mxu0 %v802
        %v870 = vpop.f32.mrb[0].mxu0
        %v871 = vadd.f32 0.0, %v870
        %v872 = vpop.f32.mrb[0].mxu0
        %873 = vdwg.mxu0
        %874 = vrot.lane.b32.xlu0 %v697, 120
        %v875 = vpop.permute.xlu0 %874
        %876 = vrot.lane.b32.xlu0 %v697, 88
        %v877 = vpop.permute.xlu0 %876
        %v878 = vsel %vm710, %v875, 0
        %v880 = vsel %vm710, %v877, 0
        %882 = vmatprep.subr.mxu0 0.0
        %883 = vmatpush1.xpose.msra.mxu0 %v880
        %884 = vmatprep.subr.mxu0 0.0
        %885 = vmatpush1.xpose.msra.mxu0 0.0
        %886 = vmatprep.subr.mxu0 0.0
        %887 = vmatpush1.xpose.msra.mxu0 0.0
        %888 = vmatprep.subr.mxu0 0.0
        %889 = vmatpush1.xpose.msra.mxu0 0.0
        %890 = vmatprep.subr.mxu0 0.0
        %891 = vmatpush1.xpose.msra.mxu0 0.0
        %892 = vmatprep.subr.mxu0 0.0
        %893 = vmatpush1.xpose.msra.mxu0 0.0
        %894 = vmatprep.subr.mxu0 0.0
        %895 = vmatpush1.xpose.msra.mxu0 0.0
        %896 = vmatprep.subr.mxu0 0.0
        %897 = vmatpush1.xpose.msra.mxu0 0.0
        %898 = vmatprep.subr.mxu0 0.0
        %899 = vmatpush1.xpose.msra.mxu0 0.0
        %900 = vmatprep.subr.mxu0 0.0
        %901 = vmatpush1.xpose.msra.mxu0 0.0
        %902 = vmatprep.subr.mxu0 0.0
        %903 = vmatpush1.xpose.msra.mxu0 0.0
        %904 = vmatprep.subr.mxu0 0.0
        %905 = vmatpush1.xpose.msra.mxu0 0.0
        %906 = vmatprep.subr.mxu0 0.0
        %907 = vmatpush1.xpose.msra.mxu0 0.0
        %908 = vmatprep.subr.mxu0 0.0
        %909 = vmatpush1.xpose.msra.mxu0 0.0
        %910 = vmatprep.subr.mxu0 0.0
        %911 = vmatpush1.xpose.msra.mxu0 0.0
        %912 = vmatprep.subr.mxu0 0.0
        %913 = vmatpush1.xpose.msra.mxu0 0.0
        %914 = vmatprep.subr.mxu0 0.0
        %915 = vmatpush1.xpose.msra.mxu0 0.0
        %916 = vmatprep.subr.mxu0 0.0
        %917 = vmatpush1.xpose.msra.mxu0 0.0
        %918 = vmatprep.subr.mxu0 0.0
        %919 = vmatpush1.xpose.msra.mxu0 0.0
        %920 = vmatprep.subr.mxu0 0.0
        %921 = vmatpush1.xpose.msra.mxu0 0.0
        %922 = vmatprep.subr.mxu0 0.0
        %923 = vmatpush1.xpose.msra.mxu0 0.0
        %924 = vmatprep.subr.mxu0 0.0
        %925 = vmatpush1.xpose.msra.mxu0 0.0
        %926 = vmatprep.subr.mxu0 0.0
        %927 = vmatpush1.xpose.msra.mxu0 0.0
        %928 = vmatprep.subr.mxu0 0.0
        %929 = vmatpush1.xpose.msra.mxu0 0.0
        %930 = vmatprep.subr.mxu0 0.0
        %931 = vmatpush1.xpose.msra.mxu0 0.0
        %932 = vmatprep.subr.mxu0 0.0
        %933 = vmatpush1.xpose.msra.mxu0 0.0
        %934 = vmatprep.subr.mxu0 0.0
        %935 = vmatpush1.xpose.msra.mxu0 0.0
        %936 = vmatprep.subr.mxu0 0.0
        %937 = vmatpush1.xpose.msra.mxu0 0.0
        %938 = vmatprep.subr.mxu0 0.0
        %939 = vmatpush1.xpose.msra.mxu0 0.0
        %940 = vmatprep.subr.mxu0 0.0
        %941 = vmatpush1.xpose.msra.mxu0 0.0
        %942 = vmatprep.subr.mxu0 0.0
        %943 = vmatpush1.xpose.msra.mxu0 0.0
        %944 = vmatprep.subr.mxu0 0.0
        %945 = vmatpush1.xpose.msra.mxu0 0.0
        %946 = vmatprep.mubr.f32.mxu0 0.0
        %947 = vmatmul.mubr.f32.gmra.mrb[0].mxu0 %v878
        %v948 = vpop.f32.mrb[0].mxu0
        %v949 = vadd.f32 0.0, %v948
        %v950 = vpop.f32.mrb[0].mxu0
        %951 = vdwg.mxu0
        %v952 = vmul.f32 %v949, 0.35355338
        %v953 = vsel %vm706, %v952, -1e+30
        %v954 = vsel %vm710, %v953, -inf
        %955 = vmax.xlane.f32.xlu0 %v954
        %v956 = vpop.xlane.xlu0 %955
        %v957 = vsub.f32 %v953, %v956
        %v958 = vmul.f32 %v957, 1.442695
        %v959 = vpow.pop %v958
        %v960 = vsel %vm710, %v959, 0.0
        %961 = vadd.xlane.f32.xlu0 %v960
        %v962 = vpop.xlane.xlu0 %961
        %v963 = vrcp.pop %v962
        %v964 = vmul.f32 %v959, %v963
        %965 = vrot.lane.b32.xlu0 %v697, 56
        %v966 = vpop.permute.xlu0 %965
        %v969 = vsel %vm710, %v964, 0
        %971 = vmatprep.subr.mxu0 0.0
        %972 = vmatpush1.msra.mxu0 %v966
        %973 = vmatprep.subr.mxu0 0.0
        %974 = vmatpush1.msra.mxu0 0.0
        %975 = vmatprep.subr.mxu0 0.0
        %976 = vmatpush1.msra.mxu0 0.0
        %977 = vmatprep.subr.mxu0 0.0
        %978 = vmatpush1.msra.mxu0 0.0
        %979 = vmatprep.subr.mxu0 0.0
        %980 = vmatpush1.msra.mxu0 0.0
        %981 = vmatprep.subr.mxu0 0.0
        %982 = vmatpush1.msra.mxu0 0.0
        %983 = vmatprep.subr.mxu0 0.0
        %984 = vmatpush1.msra.mxu0 0.0
        %985 = vmatprep.subr.mxu0 0.0
        %986 = vmatpush1.msra.mxu0 0.0
        %987 = vmatprep.subr.mxu0 0.0
        %988 = vmatpush1.msra.mxu0 0.0
        %989 = vmatprep.subr.mxu0 0.0
        %990 = vmatpush1.msra.mxu0 0.0
        %991 = vmatprep.subr.mxu0 0.0
        %992 = vmatpush1.msra.mxu0 0.0
        %993 = vmatprep.subr.mxu0 0.0
        %994 = vmatpush1.msra.mxu0 0.0
        %995 = vmatprep.subr.mxu0 0.0
        %996 = vmatpush1.msra.mxu0 0.0
        %997 = vmatprep.subr.mxu0 0.0
        %998 = vmatpush1.msra.mxu0 0.0
        %999 = vmatprep.subr.mxu0 0.0
        %1000 = vmatpush1.msra.mxu0 0.0
        %1001 = vmatprep.subr.mxu0 0.0
        %1002 = vmatpush1.msra.mxu0 0.0
        %1003 = vmatprep.subr.mxu0 0.0
        %1004 = vmatpush1.msra.mxu0 0.0
        %1005 = vmatprep.subr.mxu0 0.0
        %1006 = vmatpush1.msra.mxu0 0.0
        %1007 = vmatprep.subr.mxu0 0.0
        %1008 = vmatpush1.msra.mxu0 0.0
        %1009 = vmatprep.subr.mxu0 0.0
        %1010 = vmatpush1.msra.mxu0 0.0
        %1011 = vmatprep.subr.mxu0 0.0
        %1012 = vmatpush1.msra.mxu0 0.0
        %1013 = vmatprep.subr.mxu0 0.0
        %1014 = vmatpush1.msra.mxu0 0.0
        %1015 = vmatprep.subr.mxu0 0.0
        %1016 = vmatpush1.msra.mxu0 0.0
        %1017 = vmatprep.subr.mxu0 0.0
        %1018 = vmatpush1.msra.mxu0 0.0
        %1019 = vmatprep.subr.mxu0 0.0
        %1020 = vmatpush1.msra.mxu0 0.0
        %1021 = vmatprep.subr.mxu0 0.0
        %1022 = vmatpush1.msra.mxu0 0.0
        %1023 = vmatprep.subr.mxu0 0.0
        %1024 = vmatpush1.msra.mxu0 0.0
        %1025 = vmatprep.subr.mxu0 0.0
        %1026 = vmatpush1.msra.mxu0 0.0
        %1027 = vmatprep.subr.mxu0 0.0
        %1028 = vmatpush1.msra.mxu0 0.0
        %1029 = vmatprep.subr.mxu0 0.0
        %1030 = vmatpush1.msra.mxu0 0.0
        %1031 = vmatprep.subr.mxu0 0.0
        %1032 = vmatpush1.msra.mxu0 0.0
        %1033 = vmatprep.subr.mxu0 0.0
        %1034 = vmatpush1.msra.mxu0 0.0
        %1035 = vmatprep.mubr.f32.mxu0 0.0
        %1036 = vmatmul.mubr.f32.gmra.mrb[0].mxu0 %v969
        %v1037 = vpop.f32.mrb[0].mxu0
        %v1038 = vadd.f32 0.0, %v1037
        %v1039 = vpop.f32.mrb[0].mxu0
        %1040 = vdwg.mxu0
        %1041 = vrot.lane.b32.xlu0 %v697, 112
        %v1042 = vpop.permute.xlu0 %1041
        %1043 = vrot.lane.b32.xlu0 %v697, 80
        %v1044 = vpop.permute.xlu0 %1043
        %v1045 = vsel %vm710, %v1042, 0
        %v1047 = vsel %vm710, %v1044, 0
        %1049 = vmatprep.subr.mxu0 0.0
        %1050 = vmatpush1.xpose.msra.mxu0 %v1047
        %1051 = vmatprep.subr.mxu0 0.0
        %1052 = vmatpush1.xpose.msra.mxu0 0.0
        %1053 = vmatprep.subr.mxu0 0.0
        %1054 = vmatpush1.xpose.msra.mxu0 0.0
        %1055 = vmatprep.subr.mxu0 0.0
        %1056 = vmatpush1.xpose.msra.mxu0 0.0
        %1057 = vmatprep.subr.mxu0 0.0
        %1058 = vmatpush1.xpose.msra.mxu0 0.0
        %1059 = vmatprep.subr.mxu0 0.0
        %1060 = vmatpush1.xpose.msra.mxu0 0.0
        %1061 = vmatprep.subr.mxu0 0.0
        %1062 = vmatpush1.xpose.msra.mxu0 0.0
        %1063 = vmatprep.subr.mxu0 0.0
        %1064 = vmatpush1.xpose.msra.mxu0 0.0
        %1065 = vmatprep.subr.mxu0 0.0
        %1066 = vmatpush1.xpose.msra.mxu0 0.0
        %1067 = vmatprep.subr.mxu0 0.0
        %1068 = vmatpush1.xpose.msra.mxu0 0.0
        %1069 = vmatprep.subr.mxu0 0.0
        %1070 = vmatpush1.xpose.msra.mxu0 0.0
        %1071 = vmatprep.subr.mxu0 0.0
        %1072 = vmatpush1.xpose.msra.mxu0 0.0
        %1073 = vmatprep.subr.mxu0 0.0
        %1074 = vmatpush1.xpose.msra.mxu0 0.0
        %1075 = vmatprep.subr.mxu0 0.0
        %1076 = vmatpush1.xpose.msra.mxu0 0.0
        %1077 = vmatprep.subr.mxu0 0.0
        %1078 = vmatpush1.xpose.msra.mxu0 0.0
        %1079 = vmatprep.subr.mxu0 0.0
        %1080 = vmatpush1.xpose.msra.mxu0 0.0
        %1081 = vmatprep.subr.mxu0 0.0
        %1082 = vmatpush1.xpose.msra.mxu0 0.0
        %1083 = vmatprep.subr.mxu0 0.0
        %1084 = vmatpush1.xpose.msra.mxu0 0.0
        %1085 = vmatprep.subr.mxu0 0.0
        %1086 = vmatpush1.xpose.msra.mxu0 0.0
        %1087 = vmatprep.subr.mxu0 0.0
        %1088 = vmatpush1.xpose.msra.mxu0 0.0
        %1089 = vmatprep.subr.mxu0 0.0
        %1090 = vmatpush1.xpose.msra.mxu0 0.0
        %1091 = vmatprep.subr.mxu0 0.0
        %1092 = vmatpush1.xpose.msra.mxu0 0.0
        %1093 = vmatprep.subr.mxu0 0.0
        %1094 = vmatpush1.xpose.msra.mxu0 0.0
        %1095 = vmatprep.subr.mxu0 0.0
        %1096 = vmatpush1.xpose.msra.mxu0 0.0
        %1097 = vmatprep.subr.mxu0 0.0
        %1098 = vmatpush1.xpose.msra.mxu0 0.0
        %1099 = vmatprep.subr.mxu0 0.0
        %1100 = vmatpush1.xpose.msra.mxu0 0.0
        %1101 = vmatprep.subr.mxu0 0.0
        %1102 = vmatpush1.xpose.msra.mxu0 0.0
        %1103 = vmatprep.subr.mxu0 0.0
        %1104 = vmatpush1.xpose.msra.mxu0 0.0
        %1105 = vmatprep.subr.mxu0 0.0
        %1106 = vmatpush1.xpose.msra.mxu0 0.0
        %1107 = vmatprep.subr.mxu0 0.0
        %1108 = vmatpush1.xpose.msra.mxu0 0.0
        %1109 = vmatprep.subr.mxu0 0.0
        %1110 = vmatpush1.xpose.msra.mxu0 0.0
        %1111 = vmatprep.subr.mxu0 0.0
        %1112 = vmatpush1.xpose.msra.mxu0 0.0
        %1113 = vmatprep.mubr.f32.mxu0 0.0
        %1114 = vmatmul.mubr.f32.gmra.mrb[0].mxu0 %v1045
        %v1115 = vpop.f32.mrb[0].mxu0
        %v1116 = vadd.f32 0.0, %v1115
        %v1117 = vpop.f32.mrb[0].mxu0
        %1118 = vdwg.mxu0
        %v1119 = vmul.f32 %v1116, 0.35355338
        %v1120 = vsel %vm706, %v1119, -1e+30
        %v1121 = vsel %vm710, %v1120, -inf
        %1122 = vmax.xlane.f32.xlu0 %v1121
        %v1123 = vpop.xlane.xlu0 %1122
        %v1124 = vsub.f32 %v1120, %v1123
        %v1125 = vmul.f32 %v1124, 1.442695
        %v1126 = vpow.pop %v1125
        %v1127 = vsel %vm710, %v1126, 0.0
        %1128 = vadd.xlane.f32.xlu0 %v1127
        %v1129 = vpop.xlane.xlu0 %1128
        %v1130 = vrcp.pop %v1129
        %v1131 = vmul.f32 %v1126, %v1130
        %1132 = vrot.lane.b32.xlu0 %v697, 48
        %v1133 = vpop.permute.xlu0 %1132
        %v1136 = vsel %vm710, %v1131, 0
        %1138 = vmatprep.subr.mxu0 0.0
        %1139 = vmatpush1.msra.mxu0 %v1133
        %1140 = vmatprep.subr.mxu0 0.0
        %1141 = vmatpush1.msra.mxu0 0.0
        %1142 = vmatprep.subr.mxu0 0.0
        %1143 = vmatpush1.msra.mxu0 0.0
        %1144 = vmatprep.subr.mxu0 0.0
        %1145 = vmatpush1.msra.mxu0 0.0
        %1146 = vmatprep.subr.mxu0 0.0
        %1147 = vmatpush1.msra.mxu0 0.0
        %1148 = vmatprep.subr.mxu0 0.0
        %1149 = vmatpush1.msra.mxu0 0.0
        %1150 = vmatprep.subr.mxu0 0.0
        %1151 = vmatpush1.msra.mxu0 0.0
        %1152 = vmatprep.subr.mxu0 0.0
        %1153 = vmatpush1.msra.mxu0 0.0
        %1154 = vmatprep.subr.mxu0 0.0
        %1155 = vmatpush1.msra.mxu0 0.0
        %1156 = vmatprep.subr.mxu0 0.0
        %1157 = vmatpush1.msra.mxu0 0.0
        %1158 = vmatprep.subr.mxu0 0.0
        %1159 = vmatpush1.msra.mxu0 0.0
        %1160 = vmatprep.subr.mxu0 0.0
        %1161 = vmatpush1.msra.mxu0 0.0
        %1162 = vmatprep.subr.mxu0 0.0
        %1163 = vmatpush1.msra.mxu0 0.0
        %1164 = vmatprep.subr.mxu0 0.0
        %1165 = vmatpush1.msra.mxu0 0.0
        %1166 = vmatprep.subr.mxu0 0.0
        %1167 = vmatpush1.msra.mxu0 0.0
        %1168 = vmatprep.subr.mxu0 0.0
        %1169 = vmatpush1.msra.mxu0 0.0
        %1170 = vmatprep.subr.mxu0 0.0
        %1171 = vmatpush1.msra.mxu0 0.0
        %1172 = vmatprep.subr.mxu0 0.0
        %1173 = vmatpush1.msra.mxu0 0.0
        %1174 = vmatprep.subr.mxu0 0.0
        %1175 = vmatpush1.msra.mxu0 0.0
        %1176 = vmatprep.subr.mxu0 0.0
        %1177 = vmatpush1.msra.mxu0 0.0
        %1178 = vmatprep.subr.mxu0 0.0
        %1179 = vmatpush1.msra.mxu0 0.0
        %1180 = vmatprep.subr.mxu0 0.0
        %1181 = vmatpush1.msra.mxu0 0.0
        %1182 = vmatprep.subr.mxu0 0.0
        %1183 = vmatpush1.msra.mxu0 0.0
        %1184 = vmatprep.subr.mxu0 0.0
        %1185 = vmatpush1.msra.mxu0 0.0
        %1186 = vmatprep.subr.mxu0 0.0
        %1187 = vmatpush1.msra.mxu0 0.0
        %1188 = vmatprep.subr.mxu0 0.0
        %1189 = vmatpush1.msra.mxu0 0.0
        %1190 = vmatprep.subr.mxu0 0.0
        %1191 = vmatpush1.msra.mxu0 0.0
        %1192 = vmatprep.subr.mxu0 0.0
        %1193 = vmatpush1.msra.mxu0 0.0
        %1194 = vmatprep.subr.mxu0 0.0
        %1195 = vmatpush1.msra.mxu0 0.0
        %1196 = vmatprep.subr.mxu0 0.0
        %1197 = vmatpush1.msra.mxu0 0.0
        %1198 = vmatprep.subr.mxu0 0.0
        %1199 = vmatpush1.msra.mxu0 0.0
        %1200 = vmatprep.subr.mxu0 0.0
        %1201 = vmatpush1.msra.mxu0 0.0
        %1202 = vmatprep.mubr.f32.mxu0 0.0
        %1203 = vmatmul.mubr.f32.gmra.mrb[0].mxu0 %v1136
        %v1204 = vpop.f32.mrb[0].mxu0
        %v1205 = vadd.f32 0.0, %v1204
        %v1206 = vpop.f32.mrb[0].mxu0
        %1207 = vdwg.mxu0
        %1208 = vrot.lane.b32.xlu0 %v697, 104
        %v1209 = vpop.permute.xlu0 %1208
        %1210 = vrot.lane.b32.xlu0 %v697, 72
        %v1211 = vpop.permute.xlu0 %1210
        %v1212 = vsel %vm710, %v1209, 0
        %v1214 = vsel %vm710, %v1211, 0
        %1216 = vmatprep.subr.mxu0 0.0
        %1217 = vmatpush1.xpose.msra.mxu0 %v1214
        %1218 = vmatprep.subr.mxu0 0.0
        %1219 = vmatpush1.xpose.msra.mxu0 0.0
        %1220 = vmatprep.subr.mxu0 0.0
        %1221 = vmatpush1.xpose.msra.mxu0 0.0
        %1222 = vmatprep.subr.mxu0 0.0
        %1223 = vmatpush1.xpose.msra.mxu0 0.0
        %1224 = vmatprep.subr.mxu0 0.0
        %1225 = vmatpush1.xpose.msra.mxu0 0.0
        %1226 = vmatprep.subr.mxu0 0.0
        %1227 = vmatpush1.xpose.msra.mxu0 0.0
        %1228 = vmatprep.subr.mxu0 0.0
        %1229 = vmatpush1.xpose.msra.mxu0 0.0
        %1230 = vmatprep.subr.mxu0 0.0
        %1231 = vmatpush1.xpose.msra.mxu0 0.0
        %1232 = vmatprep.subr.mxu0 0.0
        %1233 = vmatpush1.xpose.msra.mxu0 0.0
        %1234 = vmatprep.subr.mxu0 0.0
        %1235 = vmatpush1.xpose.msra.mxu0 0.0
        %1236 = vmatprep.subr.mxu0 0.0
        %1237 = vmatpush1.xpose.msra.mxu0 0.0
        %1238 = vmatprep.subr.mxu0 0.0
        %1239 = vmatpush1.xpose.msra.mxu0 0.0
        %1240 = vmatprep.subr.mxu0 0.0
        %1241 = vmatpush1.xpose.msra.mxu0 0.0
        %1242 = vmatprep.subr.mxu0 0.0
        %1243 = vmatpush1.xpose.msra.mxu0 0.0
        %1244 = vmatprep.subr.mxu0 0.0
        %1245 = vmatpush1.xpose.msra.mxu0 0.0
        %1246 = vmatprep.subr.mxu0 0.0
        %1247 = vmatpush1.xpose.msra.mxu0 0.0
        %1248 = vmatprep.subr.mxu0 0.0
        %1249 = vmatpush1.xpose.msra.mxu0 0.0
        %1250 = vmatprep.subr.mxu0 0.0
        %1251 = vmatpush1.xpose.msra.mxu0 0.0
        %1252 = vmatprep.subr.mxu0 0.0
        %1253 = vmatpush1.xpose.msra.mxu0 0.0
        %1254 = vmatprep.subr.mxu0 0.0
        %1255 = vmatpush1.xpose.msra.mxu0 0.0
        %1256 = vmatprep.subr.mxu0 0.0
        %1257 = vmatpush1.xpose.msra.mxu0 0.0
        %1258 = vmatprep.subr.mxu0 0.0
        %1259 = vmatpush1.xpose.msra.mxu0 0.0
        %1260 = vmatprep.subr.mxu0 0.0
        %1261 = vmatpush1.xpose.msra.mxu0 0.0
        %1262 = vmatprep.subr.mxu0 0.0
        %1263 = vmatpush1.xpose.msra.mxu0 0.0
        %1264 = vmatprep.subr.mxu0 0.0
        %1265 = vmatpush1.xpose.msra.mxu0 0.0
        %1266 = vmatprep.subr.mxu0 0.0
        %1267 = vmatpush1.xpose.msra.mxu0 0.0
        %1268 = vmatprep.subr.mxu0 0.0
        %1269 = vmatpush1.xpose.msra.mxu0 0.0
        %1270 = vmatprep.subr.mxu0 0.0
        %1271 = vmatpush1.xpose.msra.mxu0 0.0
        %1272 = vmatprep.subr.mxu0 0.0
        %1273 = vmatpush1.xpose.msra.mxu0 0.0
        %1274 = vmatprep.subr.mxu0 0.0
        %1275 = vmatpush1.xpose.msra.mxu0 0.0
        %1276 = vmatprep.subr.mxu0 0.0
        %1277 = vmatpush1.xpose.msra.mxu0 0.0
        %1278 = vmatprep.subr.mxu0 0.0
        %1279 = vmatpush1.xpose.msra.mxu0 0.0
        %1280 = vmatprep.mubr.f32.mxu0 0.0
        %1281 = vmatmul.mubr.f32.gmra.mrb[0].mxu0 %v1212
        %v1282 = vpop.f32.mrb[0].mxu0
        %v1283 = vadd.f32 0.0, %v1282
        %v1284 = vpop.f32.mrb[0].mxu0
        %1285 = vdwg.mxu0
        %v1286 = vmul.f32 %v1283, 0.35355338
        %v1287 = vsel %vm706, %v1286, -1e+30
        %v1288 = vsel %vm710, %v1287, -inf
        %1289 = vmax.xlane.f32.xlu0 %v1288
        %v1290 = vpop.xlane.xlu0 %1289
        %v1291 = vsub.f32 %v1287, %v1290
        %v1292 = vmul.f32 %v1291, 1.442695
        %v1293 = vpow.pop %v1292
        %v1294 = vsel %vm710, %v1293, 0.0
        %1295 = vadd.xlane.f32.xlu0 %v1294
        %v1296 = vpop.xlane.xlu0 %1295
        %v1297 = vrcp.pop %v1296
        %v1298 = vmul.f32 %v1293, %v1297
        %1299 = vrot.lane.b32.xlu0 %v697, 40
        %v1300 = vpop.permute.xlu0 %1299
        %v1303 = vsel %vm710, %v1298, 0
        %1305 = vmatprep.subr.mxu0 0.0
        %1306 = vmatpush1.msra.mxu0 %v1300
        %1307 = vmatprep.subr.mxu0 0.0
        %1308 = vmatpush1.msra.mxu0 0.0
        %1309 = vmatprep.subr.mxu0 0.0
        %1310 = vmatpush1.msra.mxu0 0.0
        %1311 = vmatprep.subr.mxu0 0.0
        %1312 = vmatpush1.msra.mxu0 0.0
        %1313 = vmatprep.subr.mxu0 0.0
        %1314 = vmatpush1.msra.mxu0 0.0
        %1315 = vmatprep.subr.mxu0 0.0
        %1316 = vmatpush1.msra.mxu0 0.0
        %1317 = vmatprep.subr.mxu0 0.0
        %1318 = vmatpush1.msra.mxu0 0.0
        %1319 = vmatprep.subr.mxu0 0.0
        %1320 = vmatpush1.msra.mxu0 0.0
        %1321 = vmatprep.subr.mxu0 0.0
        %1322 = vmatpush1.msra.mxu0 0.0
        %1323 = vmatprep.subr.mxu0 0.0
        %1324 = vmatpush1.msra.mxu0 0.0
        %1325 = vmatprep.subr.mxu0 0.0
        %1326 = vmatpush1.msra.mxu0 0.0
        %1327 = vmatprep.subr.mxu0 0.0
        %1328 = vmatpush1.msra.mxu0 0.0
        %1329 = vmatprep.subr.mxu0 0.0
        %1330 = vmatpush1.msra.mxu0 0.0
        %1331 = vmatprep.subr.mxu0 0.0
        %1332 = vmatpush1.msra.mxu0 0.0
        %1333 = vmatprep.subr.mxu0 0.0
        %1334 = vmatpush1.msra.mxu0 0.0
        %1335 = vmatprep.subr.mxu0 0.0
        %1336 = vmatpush1.msra.mxu0 0.0
        %1337 = vmatprep.subr.mxu0 0.0
        %1338 = vmatpush1.msra.mxu0 0.0
        %1339 = vmatprep.subr.mxu0 0.0
        %1340 = vmatpush1.msra.mxu0 0.0
        %1341 = vmatprep.subr.mxu0 0.0
        %1342 = vmatpush1.msra.mxu0 0.0
        %1343 = vmatprep.subr.mxu0 0.0
        %1344 = vmatpush1.msra.mxu0 0.0
        %1345 = vmatprep.subr.mxu0 0.0
        %1346 = vmatpush1.msra.mxu0 0.0
        %1347 = vmatprep.subr.mxu0 0.0
        %1348 = vmatpush1.msra.mxu0 0.0
        %1349 = vmatprep.subr.mxu0 0.0
        %1350 = vmatpush1.msra.mxu0 0.0
        %1351 = vmatprep.subr.mxu0 0.0
        %1352 = vmatpush1.msra.mxu0 0.0
        %1353 = vmatprep.subr.mxu0 0.0
        %1354 = vmatpush1.msra.mxu0 0.0
        %1355 = vmatprep.subr.mxu0 0.0
        %1356 = vmatpush1.msra.mxu0 0.0
        %1357 = vmatprep.subr.mxu0 0.0
        %1358 = vmatpush1.msra.mxu0 0.0
        %1359 = vmatprep.subr.mxu0 0.0
        %1360 = vmatpush1.msra.mxu0 0.0
        %1361 = vmatprep.subr.mxu0 0.0
        %1362 = vmatpush1.msra.mxu0 0.0
        %1363 = vmatprep.subr.mxu0 0.0
        %1364 = vmatpush1.msra.mxu0 0.0
        %1365 = vmatprep.subr.mxu0 0.0
        %1366 = vmatpush1.msra.mxu0 0.0
        %1367 = vmatprep.subr.mxu0 0.0
        %1368 = vmatpush1.msra.mxu0 0.0
        %1369 = vmatprep.mubr.f32.mxu0 0.0
        %1370 = vmatmul.mubr.f32.gmra.mrb[0].mxu0 %v1303
        %v1371 = vpop.f32.mrb[0].mxu0
        %v1372 = vadd.f32 0.0, %v1371
        %v1373 = vpop.f32.mrb[0].mxu0
        %1374 = vdwg.mxu0
        %1376 = vrot.lane.b32.xlu0 %v1038, 8
        %v1377 = vpop.permute.xlu0 %1376
        %1380 = vrot.lane.b32.xlu0 %v1205, 16
        %v1381 = vpop.permute.xlu0 %1380
        %1384 = vrot.lane.b32.xlu0 %v1372, 24
        %v1385 = vpop.permute.xlu0 %1384
        %v1387 = vsel %vm710, %v871, %v1377
        %vm1388 = vcmask 130048
        %v1389 = vsel %vm1388, %v1387, %v1381
        %vm1390 = vcmask 195584
        %v1391 = vsel %vm1390, %v1389, %v1385
        %v1392 = vpack.c.bf16 %v1391, %v1391
        %v1393 = vld [vmem:[%s500] sm:$0xf]
        %v1394 = vld [vmem:[%s500 + $0x4] sm:$0xf]
        %v1395 = vld [vmem:[%s500 + $0x8] sm:$0xf]
        %v1396 = vld [vmem:[%s500 + $0xc] sm:$0xf]
        %v1401 = vunpack.c.l.b16 %v1393
        %v1402 = vunpack.c.l.b16 %v1394
        %v1403 = vunpack.c.l.b16 %v1395
        %v1404 = vunpack.c.l.b16 %v1396
        %v1405 = vpack.c.b16 %v1402, %v1401
        %v1406 = vpack.c.b16 %v1404, %v1403
        %v1410 = vsel %vm617, %v1392, 0
        %1412 = vmatprep.subr.bf16.mxu0 0
        %1413 = vmatpush1.bf16.msra.mxu0 %v1405
        %1414 = vmatprep.subr.bf16.mxu0 0
        %1415 = vmatpush1.bf16.msra.mxu0 %v1406
        %1416 = vmatprep.subr.bf16.mxu0 0
        %1417 = vmatpush1.bf16.msra.mxu0 0
        %1418 = vmatprep.subr.bf16.mxu0 0
        %1419 = vmatpush1.bf16.msra.mxu0 0
        %1420 = vmatprep.subr.bf16.mxu0 0
        %1421 = vmatpush1.bf16.msra.mxu0 0
        %1422 = vmatprep.subr.bf16.mxu0 0
        %1423 = vmatpush1.bf16.msra.mxu0 0
        %1424 = vmatprep.subr.bf16.mxu0 0
        %1425 = vmatpush1.bf16.msra.mxu0 0
        %1426 = vmatprep.subr.bf16.mxu0 0
        %1427 = vmatpush1.bf16.msra.mxu0 0
        %1428 = vmatprep.subr.bf16.mxu0 0
        %1429 = vmatpush1.bf16.msra.mxu0 0
        %1430 = vmatprep.subr.bf16.mxu0 0
        %1431 = vmatpush1.bf16.msra.mxu0 0
        %1432 = vmatprep.subr.bf16.mxu0 0
        %1433 = vmatpush1.bf16.msra.mxu0 0
        %1434 = vmatprep.subr.bf16.mxu0 0
        %1435 = vmatpush1.bf16.msra.mxu0 0
        %1436 = vmatprep.subr.bf16.mxu0 0
        %1437 = vmatpush1.bf16.msra.mxu0 0
        %1438 = vmatprep.subr.bf16.mxu0 0
        %1439 = vmatpush1.bf16.msra.mxu0 0
        %1440 = vmatprep.subr.bf16.mxu0 0
        %1441 = vmatpush1.bf16.msra.mxu0 0
        %1442 = vmatprep.subr.bf16.mxu0 0
        %1443 = vmatpush1.bf16.msra.mxu0 0
        %1444 = vmatprep.mubr.bf16.mxu0 0
        %1445 = vmatmul.mubr.bf16.gmra.mrb[0].mxu0 %v1410
        %v1446 = vpop.f32.mrb[0].mxu0
        %v1447 = vadd.f32 0.0, %v1446
        %v1448 = vpop.f32.mrb[0].mxu0
        %v1449 = vpop.f32.mrb[0].mxu0
        %v1450 = vpop.f32.mrb[0].mxu0
        %1451 = vdwg.mxu0
        %v1452 = vadd.f32 %v615, %v1447
        %v1453 = vlaneseq
        %v1454 = vshrl.u32 %v1453, 7
        %v1455 = vsub.s32 4, %v1454
        %v1456 = vrot.slane %v616, %v1455
        %v1457 = vadd.f32 %v1452, %v1456
        %v1458 = vsel %vm617, %v1457, 0.0
        %1459 = vadd.xlane.f32.xlu0 %v1458
        %v1460 = vpop.xlane.xlu0 %1459
        %v1461 = vmul.f32 %v1460, %v621
        %v1462 = vsub.f32 %v1457, %v1461
        %v1463 = vmul.f32 %v1462, %v1462
        %v1464 = vsel %vm617, %v1463, 0.0
        %1465 = vadd.xlane.f32.xlu0 %v1464
        %v1466 = vpop.xlane.xlu0 %1465
        %v1467 = vmul.f32 %v1466, %v621
        %v1468 = vadd.f32 %v1467, 1e-05
        %v1469 = vrsqrt.pop %v1468
        %v1470 = vmul.f32 %v1462, %v1469
        %v1471 = vlaneseq
        %v1472 = vshrl.u32 %v1471, 7
        %v1473 = vsub.s32 2, %v1472
        %v1474 = vrot.slane %v616, %v1473
        %v1475 = vmul.f32 %v1470, %v1474
        %v1476 = vlaneseq
        %v1477 = vshrl.u32 %v1476, 7
        %v1478 = vsub.s32 3, %v1477
        %v1479 = vrot.slane %v616, %v1478
        %v1480 = vadd.f32 %v1475, %v1479
        %v1481 = vpack.c.bf16 %v1480, %v1480
        %v1482 = vld [vmem:[%s509] sm:$0xf]
        %v1483 = vld [vmem:[%s509 + $0x4] sm:$0xf]
        %v1484 = vld [vmem:[%s509 + $0x8] sm:$0xf]
        %v1485 = vld [vmem:[%s509 + $0xc] sm:$0xf]
        %v1486 = vld [vmem:[%s535] sm:$0x1]
        %v1488 = vlaneseq
        %v1489 = vshrl.u32 %v1488, 7
        %v1490 = vsub.s32 0, %v1489
        %v1491 = vrot.slane %v1486, %v1490
        %v1497 = vunpack.c.l.b16 %v1482
        %v1498 = vunpack.c.l.b16 %v1483
        %v1499 = vunpack.c.l.b16 %v1484
        %v1500 = vunpack.c.l.b16 %v1485
        %v1501 = vpack.c.b16 %v1498, %v1497
        %v1502 = vpack.c.b16 %v1500, %v1499
        %v1506 = vsel %vm617, %v1481, 0
        %1508 = vmatprep.subr.bf16.mxu0 0
        %1509 = vmatpush1.bf16.msra.mxu0 %v1501
        %1510 = vmatprep.subr.bf16.mxu0 0
        %1511 = vmatpush1.bf16.msra.mxu0 %v1502
        %1512 = vmatprep.subr.bf16.mxu0 0
        %1513 = vmatpush1.bf16.msra.mxu0 0
        %1514 = vmatprep.subr.bf16.mxu0 0
        %1515 = vmatpush1.bf16.msra.mxu0 0
        %1516 = vmatprep.subr.bf16.mxu0 0
        %1517 = vmatpush1.bf16.msra.mxu0 0
        %1518 = vmatprep.subr.bf16.mxu0 0
        %1519 = vmatpush1.bf16.msra.mxu0 0
        %1520 = vmatprep.subr.bf16.mxu0 0
        %1521 = vmatpush1.bf16.msra.mxu0 0
        %1522 = vmatprep.subr.bf16.mxu0 0
        %1523 = vmatpush1.bf16.msra.mxu0 0
        %1524 = vmatprep.subr.bf16.mxu0 0
        %1525 = vmatpush1.bf16.msra.mxu0 0
        %1526 = vmatprep.subr.bf16.mxu0 0
        %1527 = vmatpush1.bf16.msra.mxu0 0
        %1528 = vmatprep.subr.bf16.mxu0 0
        %1529 = vmatpush1.bf16.msra.mxu0 0
        %1530 = vmatprep.subr.bf16.mxu0 0
        %1531 = vmatpush1.bf16.msra.mxu0 0
        %1532 = vmatprep.subr.bf16.mxu0 0
        %1533 = vmatpush1.bf16.msra.mxu0 0
        %1534 = vmatprep.subr.bf16.mxu0 0
        %1535 = vmatpush1.bf16.msra.mxu0 0
        %1536 = vmatprep.subr.bf16.mxu0 0
        %1537 = vmatpush1.bf16.msra.mxu0 0
        %1538 = vmatprep.subr.bf16.mxu0 0
        %1539 = vmatpush1.bf16.msra.mxu0 0
        %1540 = vmatprep.mubr.bf16.mxu0 0
        %1541 = vmatmul.mubr.bf16.gmra.mrb[0].mxu0 %v1506
        %v1542 = vpop.f32.mrb[0].mxu0
        %v1543 = vadd.f32 %v1491, %v1542
        %v1544 = vpop.f32.mrb[0].mxu0
        %v1545 = vpop.f32.mrb[0].mxu0
        %v1546 = vpop.f32.mrb[0].mxu0
        %1547 = vdwg.mxu0
        %v1548 = vmax.f32 %v1543, 0.0
        %v1549 = vpack.c.bf16 %v1548, %v1548
        %v1550 = vld [vmem:[%s518] sm:$0xf]
        %v1551 = vld [vmem:[%s518 + $0x4] sm:$0xf]
        %v1552 = vld [vmem:[%s518 + $0x8] sm:$0xf]
        %v1553 = vld [vmem:[%s518 + $0xc] sm:$0xf]
        %v1554 = vld [vmem:[%s518 + $0x10] sm:$0xf]
        %v1555 = vld [vmem:[%s518 + $0x14] sm:$0xf]
        %v1556 = vld [vmem:[%s518 + $0x18] sm:$0xf]
        %v1557 = vld [vmem:[%s518 + $0x1c] sm:$0xf]
        %v1558 = vld [vmem:[%s518 + $0x20] sm:$0xf]
        %v1559 = vld [vmem:[%s518 + $0x24] sm:$0xf]
        %v1560 = vld [vmem:[%s518 + $0x28] sm:$0xf]
        %v1561 = vld [vmem:[%s518 + $0x2c] sm:$0xf]
        %v1562 = vld [vmem:[%s518 + $0x30] sm:$0xf]
        %v1563 = vld [vmem:[%s518 + $0x34] sm:$0xf]
        %v1564 = vld [vmem:[%s518 + $0x38] sm:$0xf]
        %v1565 = vld [vmem:[%s518 + $0x3c] sm:$0xf]
        %v1566 = vlaneseq
        %v1567 = vshrl.u32 %v1566, 7
        %v1568 = vsub.s32 5, %v1567
        %v1569 = vrot.slane %v616, %v1568
        %v1586 = vunpack.c.l.b16 %v1550
        %v1587 = vunpack.c.l.b16 %v1551
        %v1588 = vunpack.c.l.b16 %v1552
        %v1589 = vunpack.c.l.b16 %v1553
        %v1590 = vunpack.c.l.b16 %v1554
        %v1591 = vunpack.c.l.b16 %v1555
        %v1592 = vunpack.c.l.b16 %v1556
        %v1593 = vunpack.c.l.b16 %v1557
        %v1594 = vunpack.c.l.b16 %v1558
        %v1595 = vunpack.c.l.b16 %v1559
        %v1596 = vunpack.c.l.b16 %v1560
        %v1597 = vunpack.c.l.b16 %v1561
        %v1598 = vunpack.c.l.b16 %v1562
        %v1599 = vunpack.c.l.b16 %v1563
        %v1600 = vunpack.c.l.b16 %v1564
        %v1601 = vunpack.c.l.b16 %v1565
        %v1602 = vpack.c.b16 %v1587, %v1586
        %v1603 = vpack.c.b16 %v1589, %v1588
        %v1604 = vpack.c.b16 %v1591, %v1590
        %v1605 = vpack.c.b16 %v1593, %v1592
        %v1606 = vpack.c.b16 %v1595, %v1594
        %v1607 = vpack.c.b16 %v1597, %v1596
        %v1608 = vpack.c.b16 %v1599, %v1598
        %v1609 = vpack.c.b16 %v1601, %v1600
        %1618 = vmatprep.subr.bf16.mxu0 0
        %1619 = vmatpush1.bf16.msra.mxu0 %v1602
        %1620 = vmatprep.subr.bf16.mxu0 0
        %1621 = vmatpush1.bf16.msra.mxu0 %v1603
        %1622 = vmatprep.subr.bf16.mxu0 0
        %1623 = vmatpush1.bf16.msra.mxu0 %v1604
        %1624 = vmatprep.subr.bf16.mxu0 0
        %1625 = vmatpush1.bf16.msra.mxu0 %v1605
        %1626 = vmatprep.subr.bf16.mxu0 0
        %1627 = vmatpush1.bf16.msra.mxu0 %v1606
        %1628 = vmatprep.subr.bf16.mxu0 0
        %1629 = vmatpush1.bf16.msra.mxu0 %v1607
        %1630 = vmatprep.subr.bf16.mxu0 0
        %1631 = vmatpush1.bf16.msra.mxu0 %v1608
        %1632 = vmatprep.subr.bf16.mxu0 0
        %1633 = vmatpush1.bf16.msra.mxu0 %v1609
        %1634 = vmatprep.subr.bf16.mxu0 0
        %1635 = vmatpush1.bf16.msra.mxu0 0
        %1636 = vmatprep.subr.bf16.mxu0 0
        %1637 = vmatpush1.bf16.msra.mxu0 0
        %1638 = vmatprep.subr.bf16.mxu0 0
        %1639 = vmatpush1.bf16.msra.mxu0 0
        %1640 = vmatprep.subr.bf16.mxu0 0
        %1641 = vmatpush1.bf16.msra.mxu0 0
        %1642 = vmatprep.subr.bf16.mxu0 0
        %1643 = vmatpush1.bf16.msra.mxu0 0
        %1644 = vmatprep.subr.bf16.mxu0 0
        %1645 = vmatpush1.bf16.msra.mxu0 0
        %1646 = vmatprep.subr.bf16.mxu0 0
        %1647 = vmatpush1.bf16.msra.mxu0 0
        %1648 = vmatprep.subr.bf16.mxu0 0
        %1649 = vmatpush1.bf16.msra.mxu0 0
        %1650 = vmatprep.mubr.bf16.mxu0 0
        %1651 = vmatmul.mubr.bf16.gmra.mrb[0].mxu0 %v1549
        %v1652 = vpop.f32.mrb[0].mxu0
        %v1653 = vadd.f32 %v1569, %v1652
        %v1654 = vpop.f32.mrb[0].mxu0
        %v1655 = vpop.f32.mrb[0].mxu0
        %v1656 = vpop.f32.mrb[0].mxu0
        %1657 = vdwg.mxu0
        %v1658 = vadd.f32 %v1457, %v1653
        %1659 = vst.msk [vmem:[#allocation2] sm:$0xff] %vm617, %v1658
        %p1660 = scmp.eq.s32.totalorder %s41, 1
        // Predicated region
        $region97: #{tpu_custom_call.1} parent=55 // pred_check
          %p1661 = pneg %p1660
        $region98: #{tpu_custom_call.1} parent=55 // pred_check_branch
          %1663 = sbr.rel (%p1661) target = $region100
        $region99: #{tpu_custom_call.1} parent=55 // pred_region
          %v1664 = vld [vmem:[#allocation15] sm:$0x1]
          %v1665 = vld [vmem:[#allocation17] sm:$0x1]
          %v1666 = vsel %vm617, %v1658, 0.0
          %1667 = vadd.xlane.f32.xlu0 %v1666
          %v1668 = vpop.xlane.xlu0 %1667
          %v1669 = vmul.f32 %v1668, %v621
          %v1670 = vsub.f32 %v1658, %v1669
          %v1671 = vmul.f32 %v1670, %v1670
          %v1672 = vsel %vm617, %v1671, 0.0
          %1673 = vadd.xlane.f32.xlu0 %v1672
          %v1674 = vpop.xlane.xlu0 %1673
          %v1675 = vmul.f32 %v1674, %v621
          %v1676 = vadd.f32 %v1675, 1e-05
          %v1677 = vrsqrt.pop %v1676
          %v1678 = vmul.f32 %v1670, %v1677
          %v1680 = vlaneseq
          %v1681 = vshrl.u32 %v1680, 7
          %v1682 = vsub.s32 0, %v1681
          %v1683 = vrot.slane %v1664, %v1682
          %v1685 = vmul.f32 %v1678, %v1683
          %v1687 = vlaneseq
          %v1688 = vshrl.u32 %v1687, 7
          %v1689 = vsub.s32 0, %v1688
          %v1690 = vrot.slane %v1665, %v1689
          %v1692 = vadd.f32 %v1685, %v1690
          %v1693 = vpack.c.bf16 %v1692, %v1692
          %vm1694 = vcmask 257024
          %1695 = vst.msk [vmem:[%s606] sm:$0xf] %vm1694, %v1693
        $region100: #{tpu_custom_call.1} parent=55 // pred_fallthru
          _
        %s1696 = sand.u32 %s280, 1
        %s1697 = scalar_lea.sflag [#allocation5], %s1696
        %s1698 = sand.u32 %s280, 1
        %s1699 = smul.addr %s1698, 4
        %s1700 = scalar_lea.vmem [#allocation18], %s1699
        // Predicated region
        $region101: #{tpu_custom_call.1} parent=55 // pred_check
          %p1701 = pneg %p290
        $region102: #{tpu_custom_call.1} parent=55 // pred_check_branch
          %1703 = sbr.rel (%p1701) target = $region104
        $region103: #{tpu_custom_call.1} parent=55 // pred_region
          %s1705 = ssub.s32 64, 64
          %1706 = vsyncadd %s1697, %s1705
          %s1707 = smul.addr %s40, 64
          %s1708 = scalar_lea.hbm %s9, %s1707
          %s1710 = sshll.u32 %s1700, 4
          %s1711 = int_to_ptr.vmem [resolvable:$true] %s1710
          %1713 = dma.vmem_to_hbm [thread:$0]  %s1711, 64, %s1708, %s1697
        $region104: #{tpu_custom_call.1} parent=55 // pred_fallthru
          _
      $region56: #{tpu_custom_call.1} parent=5 // pred_fallthru
        _
      %p1714 = scmp.le.s32.totalorder 2, %s31
      // Predicated region
      $region105: #{tpu_custom_call.1} parent=5 // pred_check
        %p1715 = pneg %p1714
      $region106: #{tpu_custom_call.1} parent=5 // pred_check_branch
        %1717 = sbr.rel (%p1715) target = $region108
      $region107: #{tpu_custom_call.1} parent=5 // pred_region
        %s1718 = ssub.s32 %s31, 2
        // Predicated region
        $region109: #{tpu_custom_call.1} parent=107 // pred_check
          %p1719 = pneg %p296
        $region110: #{tpu_custom_call.1} parent=107 // pred_check_branch
          %1721 = sbr.rel (%p1719) target = $region112
        $region111: #{tpu_custom_call.1} parent=107 // pred_region
          %s1722 = sand.u32 %s281, 1
          %s1723 = scalar_lea.sflag [#allocation5], %s1722
          %s1724 = sand.u32 %s281, 1
          %s1725 = smul.addr %s1724, 4
          %s1726 = scalar_lea.vmem [#allocation18], %s1725
          %1727 = dma.done %s1723, 64
        $region112: #{tpu_custom_call.1} parent=107 // pred_fallthru
          _
      $region108: #{tpu_custom_call.1} parent=5 // pred_fallthru
        _
    $region6: #{tpu_custom_call.1} parent=1 // loop_footer
      %s35 = sadd.s32 1, %s31
    $region7: #{tpu_custom_call.1} parent=1 // loop_footer_branch
      %30 = sbr.rel target = $region3
    $region8: #{tpu_custom_call.1} parent=1 // loop_exit
      _
    %1728 = vsyncpa [#allocation4], 1
    %s1729 = scalar_lea.sflag [#allocation4], 1
    %1730 = vsyncpa %s1729, 1
    %1731 = vsyncpa [#allocation7], 1
    %s1732 = scalar_lea.sflag [#allocation7], 1
    %1733 = vsyncpa %s1732, 1
    %1734 = vsyncpa [#allocation10], 1
    %s1735 = scalar_lea.sflag [#allocation10], 1
    %1736 = vsyncpa %s1735, 1
    %1737 = vsyncpa [#allocation13], 1
    %s1738 = scalar_lea.sflag [#allocation13], 1
    %1739 = vsyncpa %s1738, 1
    %1740 = vsyncpa [#allocation16], 1
    %1741 = vsyncpa [#allocation5], 1
    %s1742 = scalar_lea.sflag [#allocation5], 1
    %1743 = vsyncpa %s1742, 1

</llo_original>
